<compile_context>
chip_gen: v5e
topology: v5e:2x2
jax: 0.10.0
libtpu: 0.0.40
codegen_flags: <defaults>
</compile_context>

<pallas_src>
import functools
import math

import jax
import jax.numpy as jnp
import numpy as np
from jax.experimental import pallas as pl
from jax.experimental.pallas import tpu as pltpu


def _rmac_regions(H, W, L):
    """Static R-MAC region list [(row, col, height, width)], incl. the global MAC."""
    ovr = 0.4
    steps = np.array([2.0, 3.0, 4.0, 5.0, 6.0, 7.0])
    w = min(W, H)
    b = (max(H, W) - w) / (steps - 1)
    idx = int(np.argmin(np.abs((w * w - w * b) / float(w * w) - ovr)))
    Wd, Hd = 0, 0
    if H < W:
        Wd = idx + 1
    elif H > W:
        Hd = idx + 1

    regions = [(0, 0, H, W)]  # global MAC term (F.max_pool2d over the full map)
    for l in range(1, L + 1):
        wl = math.floor(2 * w / (l + 1))
        if wl == 0:
            continue
        wl2 = math.floor(wl / 2 - 1)
        b = 0 if (l + Wd == 1) else (W - wl) / (l + Wd - 1)
        cenW = [int(math.floor(wl2 + k * b) - wl2) for k in range(l - 1 + Wd + 1)]
        b = 0 if (l + Hd == 1) else (H - wl) / (l + Hd - 1)
        cenH = [int(math.floor(wl2 + k * b) - wl2) for k in range(l - 1 + Hd + 1)]
        for i_ in cenH:
            for j_ in cenW:
                regions.append((i_, j_, wl, wl))
    return regions


def _dedupe_regions(regions):
    """Collapse identical rectangles; return (unique_regions, multiplicities)."""
    counts, order = {}, []
    for reg in regions:
        if reg in counts:
            counts[reg] += 1.0
        else:
            counts[reg] = 1.0
            order.append(reg)
    return order, tuple(counts[r] for r in order)


def _num_tensorcores():
    """Best-effort TensorCores-per-chip (v7x megacore=2, v5e/v6e=1)."""
    candidates = []
    try:
        info = pltpu.get_tpu_info()
        candidates.extend(
            getattr(info, a, None)
            for a in ("num_cores", "num_tensorcores", "tensorcore_count",
                      "num_cores_per_chip", "cores_per_chip"))
    except Exception:
        pass
    try:
        candidates.append(getattr(jax.devices()[0], "num_cores", None))
    except Exception:
        pass
    for v in candidates:
        try:
            v = int(v)
        except (TypeError, ValueError):
            continue
        if 1 <= v <= 16:
            return v
    return 1


def _vmem_capacity_bytes():
    try:
        v = getattr(pltpu.get_tpu_info(), "vmem_capacity_bytes", None)
        if v:
            return int(v)
    except Exception:
        pass
    return 64 * 1024 * 1024  # conservative: v7x per-TC VMEM


def _rmac_kernel(bias_ref, x_ref, o_ref, *, weights, eps):
    # bias_ref: (R, HW) additive mask bias (0.0 inside region, large-neg outside),
    #           stored in the compute dtype (static table, VMEM-resident).
    # x_ref:    (Bn, C, HW) input tile, native dtype (no hoisted f32 copy).
    # o_ref:    (Bn, C)
    acc = jnp.zeros(o_ref.shape, jnp.float32)
    for r, mult in enumerate(weights):          # static unroll over deduped regions
        # Masked max in the native dtype: one VALU add + one cross-lane (XLU) max.
        biased = x_ref[...] + bias_ref[r:r + 1, :][:, None, :]
        vr = jnp.max(biased, axis=-1).astype(jnp.float32)          # (Bn, C)
        # Tiny (Bn, C) / (Bn, 1) f32 math: L2 norm over channels + accumulate.
        nrm = jnp.sqrt(jnp.sum(vr * vr, axis=-1, keepdims=True)) + eps
        acc = acc + vr * (pl.reciprocal(nrm, approx=False) * mult)
    o_ref[...] = acc.astype(o_ref.dtype)


def rmac_pallas(x, L=3, eps=1e-12):
    """R-MAC pooling.  x: (N, C, H, W) -> (N, C)."""
    if not jnp.issubdtype(x.dtype, jnp.floating):
        x = x.astype(jnp.float32)
    N, C, H, W = x.shape
    HW = H * W

    # Host-side static region geometry -> deduped additive-bias mask table.
    regions, weights = _dedupe_regions(_rmac_regions(H, W, L))
    R = len(regions)
    big_neg = -0.5 * float(jnp.finfo(x.dtype).max)   # finite: no inf/NaN hazards
    bias_np = np.full((R, H, W), big_neg, np.float32)
    for r, (i, j, h, w) in enumerate(regions):
        bias_np[r, i:i + h, j:j + w] = 0.0
    bias = jnp.asarray(bias_np.reshape(R, HW), dtype=x.dtype)

    # Free, contiguous reshape; HW stays on the lane axis (lane-dense for HW>=128).
    x3 = x.reshape(N, C, HW)

    # Batch blocking: ~8 MiB input tiles (amortizes ~0.35us/step), sublane-aligned
    # leading dim; force a multi-step grid only on multi-TC chips (v7x megacore).
    bytes_per_batch = C * HW * x.dtype.itemsize
    target_tile_bytes = 8 * 1024 * 1024
    block_n = max(1, min(N, target_tile_bytes // max(bytes_per_batch, 1)))
    n_cores = _num_tensorcores()
    if n_cores > 1 and N > 1:
        block_n = min(block_n, max(1, pl.cdiv(N, n_cores)))
    if block_n >= 8:
        block_n -= block_n % 8          # sublane-aligned x leading dim / out rows
    block_n = max(1, min(block_n, N))
    grid_n = pl.cdiv(N, block_n)

    # Explicit scoped-VMEM budget: above v5e's 16 MiB default, below v7x's 64 MiB.
    x_tile_bytes = block_n * bytes_per_batch
    vmem_limit = int(min(int(0.75 * _vmem_capacity_bytes()),
                         max(32 * 1024 * 1024, 3 * x_tile_bytes + (4 << 20))))

    return pl.pallas_call(
        functools.partial(_rmac_kernel, weights=weights, eps=float(eps)),
        out_shape=jax.ShapeDtypeStruct((N, C), x.dtype),
        grid=(grid_n,),
        in_specs=[
            pl.BlockSpec((R, HW), lambda n: (0, 0)),
            pl.BlockSpec((block_n, C, HW), lambda n: (n, 0, 0)),
        ],
        out_specs=pl.BlockSpec((block_n, C), lambda n: (n, 0)),
        compiler_params=pltpu.CompilerParams(
            dimension_semantics=("parallel",),
            vmem_limit_bytes=vmem_limit,
        ),
    )(bias, x3)


def rmac_reference(x, L=3, eps=1e-12):
    """Plain-JAX reference mirroring the PyTorch RMAC.forward."""
    xf = x.astype(jnp.float32)
    regions = _rmac_regions(x.shape[2], x.shape[3], L)
    v = jnp.zeros((x.shape[0], x.shape[1]), jnp.float32)
    for (i, j, h, w) in regions:
        vt = jnp.max(xf[:, :, i:i + h, j:j + w], axis=(2, 3))
        nrm = jnp.sqrt(jnp.sum(vt * vt, axis=1, keepdims=True))
        v = v + vt / (nrm + eps)
    return v.astype(x.dtype)


if __name__ == "__main__":
    key = jax.random.PRNGKey(0)
    N, C, H, W = 2, 4, 16, 16
    x = jax.random.normal(key, (N, C, H, W), dtype=jnp.float32)

    out = rmac_pallas(x)
    out = jax.block_until_ready(out)

    ref = rmac_reference(x)
    assert out.shape == (N, C)
    assert jnp.allclose(out, ref, rtol=1e-5, atol=1e-5), "mismatch vs reference"

    print("KERNEL_OK")
</pallas_src>

<mosaic_0001>
module attributes {stable_mosaic.version = 11 : i64} {
  func.func @_rmac_kernel(%arg0: i32, %arg1: memref<14x256xf32, #tpu.memory_space<vmem>>, %arg2: memref<2x4x256xf32, #tpu.memory_space<vmem>>, %arg3: memref<2x4xf32, #tpu.memory_space<vmem>>) attributes {dimension_semantics = [#tpu.dimension_semantics<parallel>], iteration_bounds = array<i64: 1>, scalar_prefetch = 0 : i64, scratch_operands = 0 : i64, tpu.core_type = #tpu.core_type<tc>, window_params = [{pipeline_mode = #tpu.pipeline_mode<synchronous>, transform_indices = @transform_0, window_bounds = array<i64: 14, 256>}, {transform_indices = @transform_1, window_bounds = array<i64: 2, 4, 256>}, {transform_indices = @transform_2, window_bounds = array<i64: 2, 4>}]} {
    %cst = arith.constant 0.000000e+00 : f32
    %0 = vector.broadcast %cst : f32 to vector<2x4xf32>
    %c0 = arith.constant 0 : index
    %c0_0 = arith.constant 0 : index
    %c0_1 = arith.constant 0 : index
    %1 = vector.load %arg2[%c0, %c0_0, %c0_1] : memref<2x4x256xf32, #tpu.memory_space<vmem>>, vector<2x4x256xf32>
    %c0_2 = arith.constant 0 : index
    %c0_3 = arith.constant 0 : index
    %2 = vector.load %arg1[%c0_2, %c0_3] : memref<14x256xf32, #tpu.memory_space<vmem>>, vector<1x256xf32>
    %3 = vector.shape_cast %2 : vector<1x256xf32> to vector<1x1x256xf32>
    %4 = vector.broadcast %3 : vector<1x1x256xf32> to vector<2x4x256xf32>
    %5 = arith.addf %1, %4 : vector<2x4x256xf32>
    %cst_4 = arith.constant dense<0xFF800000> : vector<2x4xf32>
    %6 = vector.multi_reduction <maximumf>, %5, %cst_4 [2] : vector<2x4x256xf32> to vector<2x4xf32>
    %7 = arith.mulf %6, %6 : vector<2x4xf32>
    %cst_5 = arith.constant dense<0.000000e+00> : vector<2xf32>
    %8 = vector.multi_reduction <add>, %7, %cst_5 [1] : vector<2x4xf32> to vector<2xf32>
    %9 = vector.shape_cast %8 : vector<2xf32> to vector<2x1xf32>
    %10 = math.sqrt %9 : vector<2x1xf32>
    %cst_6 = arith.constant 9.99999996E-13 : f32
    %11 = vector.broadcast %cst_6 : f32 to vector<2x1xf32>
    %12 = arith.addf %10, %11 : vector<2x1xf32>
    %13 = tpu.reciprocal %12 : vector<2x1xf32> -> vector<2x1xf32>
    %cst_7 = arith.constant 2.000000e+00 : f32
    %14 = vector.broadcast %cst_7 : f32 to vector<2x1xf32>
    %15 = arith.mulf %13, %14 : vector<2x1xf32>
    %16 = vector.broadcast %15 : vector<2x1xf32> to vector<2x4xf32>
    %17 = arith.mulf %6, %16 : vector<2x4xf32>
    %18 = arith.addf %0, %17 : vector<2x4xf32>
    %c0_8 = arith.constant 0 : index
    %c0_9 = arith.constant 0 : index
    %c0_10 = arith.constant 0 : index
    %19 = vector.load %arg2[%c0_8, %c0_9, %c0_10] : memref<2x4x256xf32, #tpu.memory_space<vmem>>, vector<2x4x256xf32>
    %c1 = arith.constant 1 : index
    %c0_11 = arith.constant 0 : index
    %20 = vector.load %arg1[%c1, %c0_11] : memref<14x256xf32, #tpu.memory_space<vmem>>, vector<1x256xf32>
    %21 = vector.shape_cast %20 : vector<1x256xf32> to vector<1x1x256xf32>
    %22 = vector.broadcast %21 : vector<1x1x256xf32> to vector<2x4x256xf32>
    %23 = arith.addf %19, %22 : vector<2x4x256xf32>
    %cst_12 = arith.constant dense<0xFF800000> : vector<2x4xf32>
    %24 = vector.multi_reduction <maximumf>, %23, %cst_12 [2] : vector<2x4x256xf32> to vector<2x4xf32>
    %25 = arith.mulf %24, %24 : vector<2x4xf32>
    %cst_13 = arith.constant dense<0.000000e+00> : vector<2xf32>
    %26 = vector.multi_reduction <add>, %25, %cst_13 [1] : vector<2x4xf32> to vector<2xf32>
    %27 = vector.shape_cast %26 : vector<2xf32> to vector<2x1xf32>
    %28 = math.sqrt %27 : vector<2x1xf32>
    %cst_14 = arith.constant 9.99999996E-13 : f32
    %29 = vector.broadcast %cst_14 : f32 to vector<2x1xf32>
    %30 = arith.addf %28, %29 : vector<2x1xf32>
    %31 = tpu.reciprocal %30 : vector<2x1xf32> -> vector<2x1xf32>
    %cst_15 = arith.constant 1.000000e+00 : f32
    %32 = vector.broadcast %cst_15 : f32 to vector<2x1xf32>
    %33 = arith.mulf %31, %32 : vector<2x1xf32>
    %34 = vector.broadcast %33 : vector<2x1xf32> to vector<2x4xf32>
    %35 = arith.mulf %24, %34 : vector<2x4xf32>
    %36 = arith.addf %18, %35 : vector<2x4xf32>
    %c0_16 = arith.constant 0 : index
    %c0_17 = arith.constant 0 : index
    %c0_18 = arith.constant 0 : index
    %37 = vector.load %arg2[%c0_16, %c0_17, %c0_18] : memref<2x4x256xf32, #tpu.memory_space<vmem>>, vector<2x4x256xf32>
    %c2 = arith.constant 2 : index
    %c0_19 = arith.constant 0 : index
    %38 = vector.load %arg1[%c2, %c0_19] : memref<14x256xf32, #tpu.memory_space<vmem>>, vector<1x256xf32>
    %39 = vector.shape_cast %38 : vector<1x256xf32> to vector<1x1x256xf32>
    %40 = vector.broadcast %39 : vector<1x1x256xf32> to vector<2x4x256xf32>
    %41 = arith.addf %37, %40 : vector<2x4x256xf32>
    %cst_20 = arith.constant dense<0xFF800000> : vector<2x4xf32>
    %42 = vector.multi_reduction <maximumf>, %41, %cst_20 [2] : vector<2x4x256xf32> to vector<2x4xf32>
    %43 = arith.mulf %42, %42 : vector<2x4xf32>
    %cst_21 = arith.constant dense<0.000000e+00> : vector<2xf32>
    %44 = vector.multi_reduction <add>, %43, %cst_21 [1] : vector<2x4xf32> to vector<2xf32>
    %45 = vector.shape_cast %44 : vector<2xf32> to vector<2x1xf32>
    %46 = math.sqrt %45 : vector<2x1xf32>
    %cst_22 = arith.constant 9.99999996E-13 : f32
    %47 = vector.broadcast %cst_22 : f32 to vector<2x1xf32>
    %48 = arith.addf %46, %47 : vector<2x1xf32>
    %49 = tpu.reciprocal %48 : vector<2x1xf32> -> vector<2x1xf32>
    %cst_23 = arith.constant 1.000000e+00 : f32
    %50 = vector.broadcast %cst_23 : f32 to vector<2x1xf32>
    %51 = arith.mulf %49, %50 : vector<2x1xf32>
    %52 = vector.broadcast %51 : vector<2x1xf32> to vector<2x4xf32>
    %53 = arith.mulf %42, %52 : vector<2x4xf32>
    %54 = arith.addf %36, %53 : vector<2x4xf32>
    %c0_24 = arith.constant 0 : index
    %c0_25 = arith.constant 0 : index
    %c0_26 = arith.constant 0 : index
    %55 = vector.load %arg2[%c0_24, %c0_25, %c0_26] : memref<2x4x256xf32, #tpu.memory_space<vmem>>, vector<2x4x256xf32>
    %c3 = arith.constant 3 : index
    %c0_27 = arith.constant 0 : index
    %56 = vector.load %arg1[%c3, %c0_27] : memref<14x256xf32, #tpu.memory_space<vmem>>, vector<1x256xf32>
    %57 = vector.shape_cast %56 : vector<1x256xf32> to vector<1x1x256xf32>
    %58 = vector.broadcast %57 : vector<1x1x256xf32> to vector<2x4x256xf32>
    %59 = arith.addf %55, %58 : vector<2x4x256xf32>
    %cst_28 = arith.constant dense<0xFF800000> : vector<2x4xf32>
    %60 = vector.multi_reduction <maximumf>, %59, %cst_28 [2] : vector<2x4x256xf32> to vector<2x4xf32>
    %61 = arith.mulf %60, %60 : vector<2x4xf32>
    %cst_29 = arith.constant dense<0.000000e+00> : vector<2xf32>
    %62 = vector.multi_reduction <add>, %61, %cst_29 [1] : vector<2x4xf32> to vector<2xf32>
    %63 = vector.shape_cast %62 : vector<2xf32> to vector<2x1xf32>
    %64 = math.sqrt %63 : vector<2x1xf32>
    %cst_30 = arith.constant 9.99999996E-13 : f32
    %65 = vector.broadcast %cst_30 : f32 to vector<2x1xf32>
    %66 = arith.addf %64, %65 : vector<2x1xf32>
    %67 = tpu.reciprocal %66 : vector<2x1xf32> -> vector<2x1xf32>
    %cst_31 = arith.constant 1.000000e+00 : f32
    %68 = vector.broadcast %cst_31 : f32 to vector<2x1xf32>
    %69 = arith.mulf %67, %68 : vector<2x1xf32>
    %70 = vector.broadcast %69 : vector<2x1xf32> to vector<2x4xf32>
    %71 = arith.mulf %60, %70 : vector<2x4xf32>
    %72 = arith.addf %54, %71 : vector<2x4xf32>
    %c0_32 = arith.constant 0 : index
    %c0_33 = arith.constant 0 : index
    %c0_34 = arith.constant 0 : index
    %73 = vector.load %arg2[%c0_32, %c0_33, %c0_34] : memref<2x4x256xf32, #tpu.memory_space<vmem>>, vector<2x4x256xf32>
    %c4 = arith.constant 4 : index
    %c0_35 = arith.constant 0 : index
    %74 = vector.load %arg1[%c4, %c0_35] : memref<14x256xf32, #tpu.memory_space<vmem>>, vector<1x256xf32>
    %75 = vector.shape_cast %74 : vector<1x256xf32> to vector<1x1x256xf32>
    %76 = vector.broadcast %75 : vector<1x1x256xf32> to vector<2x4x256xf32>
    %77 = arith.addf %73, %76 : vector<2x4x256xf32>
    %cst_36 = arith.constant dense<0xFF800000> : vector<2x4xf32>
    %78 = vector.multi_reduction <maximumf>, %77, %cst_36 [2] : vector<2x4x256xf32> to vector<2x4xf32>
    %79 = arith.mulf %78, %78 : vector<2x4xf32>
    %cst_37 = arith.constant dense<0.000000e+00> : vector<2xf32>
    %80 = vector.multi_reduction <add>, %79, %cst_37 [1] : vector<2x4xf32> to vector<2xf32>
    %81 = vector.shape_cast %80 : vector<2xf32> to vector<2x1xf32>
    %82 = math.sqrt %81 : vector<2x1xf32>
    %cst_38 = arith.constant 9.99999996E-13 : f32
    %83 = vector.broadcast %cst_38 : f32 to vector<2x1xf32>
    %84 = arith.addf %82, %83 : vector<2x1xf32>
    %85 = tpu.reciprocal %84 : vector<2x1xf32> -> vector<2x1xf32>
    %cst_39 = arith.constant 1.000000e+00 : f32
    %86 = vector.broadcast %cst_39 : f32 to vector<2x1xf32>
    %87 = arith.mulf %85, %86 : vector<2x1xf32>
    %88 = vector.broadcast %87 : vector<2x1xf32> to vector<2x4xf32>
    %89 = arith.mulf %78, %88 : vector<2x4xf32>
    %90 = arith.addf %72, %89 : vector<2x4xf32>
    %c0_40 = arith.constant 0 : index
    %c0_41 = arith.constant 0 : index
    %c0_42 = arith.constant 0 : index
    %91 = vector.load %arg2[%c0_40, %c0_41, %c0_42] : memref<2x4x256xf32, #tpu.memory_space<vmem>>, vector<2x4x256xf32>
    %c5 = arith.constant 5 : index
    %c0_43 = arith.constant 0 : index
    %92 = vector.load %arg1[%c5, %c0_43] : memref<14x256xf32, #tpu.memory_space<vmem>>, vector<1x256xf32>
    %93 = vector.shape_cast %92 : vector<1x256xf32> to vector<1x1x256xf32>
    %94 = vector.broadcast %93 : vector<1x1x256xf32> to vector<2x4x256xf32>
    %95 = arith.addf %91, %94 : vector<2x4x256xf32>
    %cst_44 = arith.constant dense<0xFF800000> : vector<2x4xf32>
    %96 = vector.multi_reduction <maximumf>, %95, %cst_44 [2] : vector<2x4x256xf32> to vector<2x4xf32>
    %97 = arith.mulf %96, %96 : vector<2x4xf32>
    %cst_45 = arith.constant dense<0.000000e+00> : vector<2xf32>
    %98 = vector.multi_reduction <add>, %97, %cst_45 [1] : vector<2x4xf32> to vector<2xf32>
    %99 = vector.shape_cast %98 : vector<2xf32> to vector<2x1xf32>
    %100 = math.sqrt %99 : vector<2x1xf32>
    %cst_46 = arith.constant 9.99999996E-13 : f32
    %101 = vector.broadcast %cst_46 : f32 to vector<2x1xf32>
    %102 = arith.addf %100, %101 : vector<2x1xf32>
    %103 = tpu.reciprocal %102 : vector<2x1xf32> -> vector<2x1xf32>
    %cst_47 = arith.constant 1.000000e+00 : f32
    %104 = vector.broadcast %cst_47 : f32 to vector<2x1xf32>
    %105 = arith.mulf %103, %104 : vector<2x1xf32>
    %106 = vector.broadcast %105 : vector<2x1xf32> to vector<2x4xf32>
    %107 = arith.mulf %96, %106 : vector<2x4xf32>
    %108 = arith.addf %90, %107 : vector<2x4xf32>
    %c0_48 = arith.constant 0 : index
    %c0_49 = arith.constant 0 : index
    %c0_50 = arith.constant 0 : index
    %109 = vector.load %arg2[%c0_48, %c0_49, %c0_50] : memref<2x4x256xf32, #tpu.memory_space<vmem>>, vector<2x4x256xf32>
    %c6 = arith.constant 6 : index
    %c0_51 = arith.constant 0 : index
    %110 = vector.load %arg1[%c6, %c0_51] : memref<14x256xf32, #tpu.memory_space<vmem>>, vector<1x256xf32>
    %111 = vector.shape_cast %110 : vector<1x256xf32> to vector<1x1x256xf32>
    %112 = vector.broadcast %111 : vector<1x1x256xf32> to vector<2x4x256xf32>
    %113 = arith.addf %109, %112 : vector<2x4x256xf32>
    %cst_52 = arith.constant dense<0xFF800000> : vector<2x4xf32>
    %114 = vector.multi_reduction <maximumf>, %113, %cst_52 [2] : vector<2x4x256xf32> to vector<2x4xf32>
    %115 = arith.mulf %114, %114 : vector<2x4xf32>
    %cst_53 = arith.constant dense<0.000000e+00> : vector<2xf32>
    %116 = vector.multi_reduction <add>, %115, %cst_53 [1] : vector<2x4xf32> to vector<2xf32>
    %117 = vector.shape_cast %116 : vector<2xf32> to vector<2x1xf32>
    %118 = math.sqrt %117 : vector<2x1xf32>
    %cst_54 = arith.constant 9.99999996E-13 : f32
    %119 = vector.broadcast %cst_54 : f32 to vector<2x1xf32>
    %120 = arith.addf %118, %119 : vector<2x1xf32>
    %121 = tpu.reciprocal %120 : vector<2x1xf32> -> vector<2x1xf32>
    %cst_55 = arith.constant 1.000000e+00 : f32
    %122 = vector.broadcast %cst_55 : f32 to vector<2x1xf32>
    %123 = arith.mulf %121, %122 : vector<2x1xf32>
    %124 = vector.broadcast %123 : vector<2x1xf32> to vector<2x4xf32>
    %125 = arith.mulf %114, %124 : vector<2x4xf32>
    %126 = arith.addf %108, %125 : vector<2x4xf32>
    %c0_56 = arith.constant 0 : index
    %c0_57 = arith.constant 0 : index
    %c0_58 = arith.constant 0 : index
    %127 = vector.load %arg2[%c0_56, %c0_57, %c0_58] : memref<2x4x256xf32, #tpu.memory_space<vmem>>, vector<2x4x256xf32>
    %c7 = arith.constant 7 : index
    %c0_59 = arith.constant 0 : index
    %128 = vector.load %arg1[%c7, %c0_59] : memref<14x256xf32, #tpu.memory_space<vmem>>, vector<1x256xf32>
    %129 = vector.shape_cast %128 : vector<1x256xf32> to vector<1x1x256xf32>
    %130 = vector.broadcast %129 : vector<1x1x256xf32> to vector<2x4x256xf32>
    %131 = arith.addf %127, %130 : vector<2x4x256xf32>
    %cst_60 = arith.constant dense<0xFF800000> : vector<2x4xf32>
    %132 = vector.multi_reduction <maximumf>, %131, %cst_60 [2] : vector<2x4x256xf32> to vector<2x4xf32>
    %133 = arith.mulf %132, %132 : vector<2x4xf32>
    %cst_61 = arith.constant dense<0.000000e+00> : vector<2xf32>
    %134 = vector.multi_reduction <add>, %133, %cst_61 [1] : vector<2x4xf32> to vector<2xf32>
    %135 = vector.shape_cast %134 : vector<2xf32> to vector<2x1xf32>
    %136 = math.sqrt %135 : vector<2x1xf32>
    %cst_62 = arith.constant 9.99999996E-13 : f32
    %137 = vector.broadcast %cst_62 : f32 to vector<2x1xf32>
    %138 = arith.addf %136, %137 : vector<2x1xf32>
    %139 = tpu.reciprocal %138 : vector<2x1xf32> -> vector<2x1xf32>
    %cst_63 = arith.constant 1.000000e+00 : f32
    %140 = vector.broadcast %cst_63 : f32 to vector<2x1xf32>
    %141 = arith.mulf %139, %140 : vector<2x1xf32>
    %142 = vector.broadcast %141 : vector<2x1xf32> to vector<2x4xf32>
    %143 = arith.mulf %132, %142 : vector<2x4xf32>
    %144 = arith.addf %126, %143 : vector<2x4xf32>
    %c0_64 = arith.constant 0 : index
    %c0_65 = arith.constant 0 : index
    %c0_66 = arith.constant 0 : index
    %145 = vector.load %arg2[%c0_64, %c0_65, %c0_66] : memref<2x4x256xf32, #tpu.memory_space<vmem>>, vector<2x4x256xf32>
    %c8 = arith.constant 8 : index
    %c0_67 = arith.constant 0 : index
    %146 = vector.load %arg1[%c8, %c0_67] : memref<14x256xf32, #tpu.memory_space<vmem>>, vector<1x256xf32>
    %147 = vector.shape_cast %146 : vector<1x256xf32> to vector<1x1x256xf32>
    %148 = vector.broadcast %147 : vector<1x1x256xf32> to vector<2x4x256xf32>
    %149 = arith.addf %145, %148 : vector<2x4x256xf32>
    %cst_68 = arith.constant dense<0xFF800000> : vector<2x4xf32>
    %150 = vector.multi_reduction <maximumf>, %149, %cst_68 [2] : vector<2x4x256xf32> to vector<2x4xf32>
    %151 = arith.mulf %150, %150 : vector<2x4xf32>
    %cst_69 = arith.constant dense<0.000000e+00> : vector<2xf32>
    %152 = vector.multi_reduction <add>, %151, %cst_69 [1] : vector<2x4xf32> to vector<2xf32>
    %153 = vector.shape_cast %152 : vector<2xf32> to vector<2x1xf32>
    %154 = math.sqrt %153 : vector<2x1xf32>
    %cst_70 = arith.constant 9.99999996E-13 : f32
    %155 = vector.broadcast %cst_70 : f32 to vector<2x1xf32>
    %156 = arith.addf %154, %155 : vector<2x1xf32>
    %157 = tpu.reciprocal %156 : vector<2x1xf32> -> vector<2x1xf32>
    %cst_71 = arith.constant 1.000000e+00 : f32
    %158 = vector.broadcast %cst_71 : f32 to vector<2x1xf32>
    %159 = arith.mulf %157, %158 : vector<2x1xf32>
    %160 = vector.broadcast %159 : vector<2x1xf32> to vector<2x4xf32>
    %161 = arith.mulf %150, %160 : vector<2x4xf32>
    %162 = arith.addf %144, %161 : vector<2x4xf32>
    %c0_72 = arith.constant 0 : index
    %c0_73 = arith.constant 0 : index
    %c0_74 = arith.constant 0 : index
    %163 = vector.load %arg2[%c0_72, %c0_73, %c0_74] : memref<2x4x256xf32, #tpu.memory_space<vmem>>, vector<2x4x256xf32>
    %c9 = arith.constant 9 : index
    %c0_75 = arith.constant 0 : index
    %164 = vector.load %arg1[%c9, %c0_75] : memref<14x256xf32, #tpu.memory_space<vmem>>, vector<1x256xf32>
    %165 = vector.shape_cast %164 : vector<1x256xf32> to vector<1x1x256xf32>
    %166 = vector.broadcast %165 : vector<1x1x256xf32> to vector<2x4x256xf32>
    %167 = arith.addf %163, %166 : vector<2x4x256xf32>
    %cst_76 = arith.constant dense<0xFF800000> : vector<2x4xf32>
    %168 = vector.multi_reduction <maximumf>, %167, %cst_76 [2] : vector<2x4x256xf32> to vector<2x4xf32>
    %169 = arith.mulf %168, %168 : vector<2x4xf32>
    %cst_77 = arith.constant dense<0.000000e+00> : vector<2xf32>
    %170 = vector.multi_reduction <add>, %169, %cst_77 [1] : vector<2x4xf32> to vector<2xf32>
    %171 = vector.shape_cast %170 : vector<2xf32> to vector<2x1xf32>
    %172 = math.sqrt %171 : vector<2x1xf32>
    %cst_78 = arith.constant 9.99999996E-13 : f32
    %173 = vector.broadcast %cst_78 : f32 to vector<2x1xf32>
    %174 = arith.addf %172, %173 : vector<2x1xf32>
    %175 = tpu.reciprocal %174 : vector<2x1xf32> -> vector<2x1xf32>
    %cst_79 = arith.constant 1.000000e+00 : f32
    %176 = vector.broadcast %cst_79 : f32 to vector<2x1xf32>
    %177 = arith.mulf %175, %176 : vector<2x1xf32>
    %178 = vector.broadcast %177 : vector<2x1xf32> to vector<2x4xf32>
    %179 = arith.mulf %168, %178 : vector<2x4xf32>
    %180 = arith.addf %162, %179 : vector<2x4xf32>
    %c0_80 = arith.constant 0 : index
    %c0_81 = arith.constant 0 : index
    %c0_82 = arith.constant 0 : index
    %181 = vector.load %arg2[%c0_80, %c0_81, %c0_82] : memref<2x4x256xf32, #tpu.memory_space<vmem>>, vector<2x4x256xf32>
    %c10 = arith.constant 10 : index
    %c0_83 = arith.constant 0 : index
    %182 = vector.load %arg1[%c10, %c0_83] : memref<14x256xf32, #tpu.memory_space<vmem>>, vector<1x256xf32>
    %183 = vector.shape_cast %182 : vector<1x256xf32> to vector<1x1x256xf32>
    %184 = vector.broadcast %183 : vector<1x1x256xf32> to vector<2x4x256xf32>
    %185 = arith.addf %181, %184 : vector<2x4x256xf32>
    %cst_84 = arith.constant dense<0xFF800000> : vector<2x4xf32>
    %186 = vector.multi_reduction <maximumf>, %185, %cst_84 [2] : vector<2x4x256xf32> to vector<2x4xf32>
    %187 = arith.mulf %186, %186 : vector<2x4xf32>
    %cst_85 = arith.constant dense<0.000000e+00> : vector<2xf32>
    %188 = vector.multi_reduction <add>, %187, %cst_85 [1] : vector<2x4xf32> to vector<2xf32>
    %189 = vector.shape_cast %188 : vector<2xf32> to vector<2x1xf32>
    %190 = math.sqrt %189 : vector<2x1xf32>
    %cst_86 = arith.constant 9.99999996E-13 : f32
    %191 = vector.broadcast %cst_86 : f32 to vector<2x1xf32>
    %192 = arith.addf %190, %191 : vector<2x1xf32>
    %193 = tpu.reciprocal %192 : vector<2x1xf32> -> vector<2x1xf32>
    %cst_87 = arith.constant 1.000000e+00 : f32
    %194 = vector.broadcast %cst_87 : f32 to vector<2x1xf32>
    %195 = arith.mulf %193, %194 : vector<2x1xf32>
    %196 = vector.broadcast %195 : vector<2x1xf32> to vector<2x4xf32>
    %197 = arith.mulf %186, %196 : vector<2x4xf32>
    %198 = arith.addf %180, %197 : vector<2x4xf32>
    %c0_88 = arith.constant 0 : index
    %c0_89 = arith.constant 0 : index
    %c0_90 = arith.constant 0 : index
    %199 = vector.load %arg2[%c0_88, %c0_89, %c0_90] : memref<2x4x256xf32, #tpu.memory_space<vmem>>, vector<2x4x256xf32>
    %c11 = arith.constant 11 : index
    %c0_91 = arith.constant 0 : index
    %200 = vector.load %arg1[%c11, %c0_91] : memref<14x256xf32, #tpu.memory_space<vmem>>, vector<1x256xf32>
    %201 = vector.shape_cast %200 : vector<1x256xf32> to vector<1x1x256xf32>
    %202 = vector.broadcast %201 : vector<1x1x256xf32> to vector<2x4x256xf32>
    %203 = arith.addf %199, %202 : vector<2x4x256xf32>
    %cst_92 = arith.constant dense<0xFF800000> : vector<2x4xf32>
    %204 = vector.multi_reduction <maximumf>, %203, %cst_92 [2] : vector<2x4x256xf32> to vector<2x4xf32>
    %205 = arith.mulf %204, %204 : vector<2x4xf32>
    %cst_93 = arith.constant dense<0.000000e+00> : vector<2xf32>
    %206 = vector.multi_reduction <add>, %205, %cst_93 [1] : vector<2x4xf32> to vector<2xf32>
    %207 = vector.shape_cast %206 : vector<2xf32> to vector<2x1xf32>
    %208 = math.sqrt %207 : vector<2x1xf32>
    %cst_94 = arith.constant 9.99999996E-13 : f32
    %209 = vector.broadcast %cst_94 : f32 to vector<2x1xf32>
    %210 = arith.addf %208, %209 : vector<2x1xf32>
    %211 = tpu.reciprocal %210 : vector<2x1xf32> -> vector<2x1xf32>
    %cst_95 = arith.constant 1.000000e+00 : f32
    %212 = vector.broadcast %cst_95 : f32 to vector<2x1xf32>
    %213 = arith.mulf %211, %212 : vector<2x1xf32>
    %214 = vector.broadcast %213 : vector<2x1xf32> to vector<2x4xf32>
    %215 = arith.mulf %204, %214 : vector<2x4xf32>
    %216 = arith.addf %198, %215 : vector<2x4xf32>
    %c0_96 = arith.constant 0 : index
    %c0_97 = arith.constant 0 : index
    %c0_98 = arith.constant 0 : index
    %217 = vector.load %arg2[%c0_96, %c0_97, %c0_98] : memref<2x4x256xf32, #tpu.memory_space<vmem>>, vector<2x4x256xf32>
    %c12 = arith.constant 12 : index
    %c0_99 = arith.constant 0 : index
    %218 = vector.load %arg1[%c12, %c0_99] : memref<14x256xf32, #tpu.memory_space<vmem>>, vector<1x256xf32>
    %219 = vector.shape_cast %218 : vector<1x256xf32> to vector<1x1x256xf32>
    %220 = vector.broadcast %219 : vector<1x1x256xf32> to vector<2x4x256xf32>
    %221 = arith.addf %217, %220 : vector<2x4x256xf32>
    %cst_100 = arith.constant dense<0xFF800000> : vector<2x4xf32>
    %222 = vector.multi_reduction <maximumf>, %221, %cst_100 [2] : vector<2x4x256xf32> to vector<2x4xf32>
    %223 = arith.mulf %222, %222 : vector<2x4xf32>
    %cst_101 = arith.constant dense<0.000000e+00> : vector<2xf32>
    %224 = vector.multi_reduction <add>, %223, %cst_101 [1] : vector<2x4xf32> to vector<2xf32>
    %225 = vector.shape_cast %224 : vector<2xf32> to vector<2x1xf32>
    %226 = math.sqrt %225 : vector<2x1xf32>
    %cst_102 = arith.constant 9.99999996E-13 : f32
    %227 = vector.broadcast %cst_102 : f32 to vector<2x1xf32>
    %228 = arith.addf %226, %227 : vector<2x1xf32>
    %229 = tpu.reciprocal %228 : vector<2x1xf32> -> vector<2x1xf32>
    %cst_103 = arith.constant 1.000000e+00 : f32
    %230 = vector.broadcast %cst_103 : f32 to vector<2x1xf32>
    %231 = arith.mulf %229, %230 : vector<2x1xf32>
    %232 = vector.broadcast %231 : vector<2x1xf32> to vector<2x4xf32>
    %233 = arith.mulf %222, %232 : vector<2x4xf32>
    %234 = arith.addf %216, %233 : vector<2x4xf32>
    %c0_104 = arith.constant 0 : index
    %c0_105 = arith.constant 0 : index
    %c0_106 = arith.constant 0 : index
    %235 = vector.load %arg2[%c0_104, %c0_105, %c0_106] : memref<2x4x256xf32, #tpu.memory_space<vmem>>, vector<2x4x256xf32>
    %c13 = arith.constant 13 : index
    %c0_107 = arith.constant 0 : index
    %236 = vector.load %arg1[%c13, %c0_107] : memref<14x256xf32, #tpu.memory_space<vmem>>, vector<1x256xf32>
    %237 = vector.shape_cast %236 : vector<1x256xf32> to vector<1x1x256xf32>
    %238 = vector.broadcast %237 : vector<1x1x256xf32> to vector<2x4x256xf32>
    %239 = arith.addf %235, %238 : vector<2x4x256xf32>
    %cst_108 = arith.constant dense<0xFF800000> : vector<2x4xf32>
    %240 = vector.multi_reduction <maximumf>, %239, %cst_108 [2] : vector<2x4x256xf32> to vector<2x4xf32>
    %241 = arith.mulf %240, %240 : vector<2x4xf32>
    %cst_109 = arith.constant dense<0.000000e+00> : vector<2xf32>
    %242 = vector.multi_reduction <add>, %241, %cst_109 [1] : vector<2x4xf32> to vector<2xf32>
    %243 = vector.shape_cast %242 : vector<2xf32> to vector<2x1xf32>
    %244 = math.sqrt %243 : vector<2x1xf32>
    %cst_110 = arith.constant 9.99999996E-13 : f32
    %245 = vector.broadcast %cst_110 : f32 to vector<2x1xf32>
    %246 = arith.addf %244, %245 : vector<2x1xf32>
    %247 = tpu.reciprocal %246 : vector<2x1xf32> -> vector<2x1xf32>
    %cst_111 = arith.constant 1.000000e+00 : f32
    %248 = vector.broadcast %cst_111 : f32 to vector<2x1xf32>
    %249 = arith.mulf %247, %248 : vector<2x1xf32>
    %250 = vector.broadcast %249 : vector<2x1xf32> to vector<2x4xf32>
    %251 = arith.mulf %240, %250 : vector<2x4xf32>
    %252 = arith.addf %234, %251 : vector<2x4xf32>
    %c0_112 = arith.constant 0 : index
    %c0_113 = arith.constant 0 : index
    %253 = vector.load %arg3[%c0_112, %c0_113] : memref<2x4xf32, #tpu.memory_space<vmem>>, vector<2x4xf32>
    tpu.vector_store %arg3[%c0_112, %c0_113], %252 {strides = array<i32>} : memref<2x4xf32, #tpu.memory_space<vmem>>, vector<2x4xf32>,
    return
  }
  func.func @transform_0(%arg0: i32) -> (i32, i32) {
    %c0_i32 = arith.constant 0 : i32
    %c0_i32_0 = arith.constant 0 : i32
    %c0_i32_1 = arith.constant 0 : i32
    return %c0_i32, %c0_i32_0 : i32, i32
  }
  func.func @transform_1(%arg0: i32) -> (i32, i32, i32) {
    %c0_i32 = arith.constant 0 : i32
    %c0_i32_0 = arith.constant 0 : i32
    %c0_i32_1 = arith.constant 0 : i32
    return %arg0, %c0_i32, %c0_i32_0 : i32, i32, i32
  }
  func.func @transform_2(%arg0: i32) -> (i32, i32) {
    %c0_i32 = arith.constant 0 : i32
    %c0_i32_0 = arith.constant 0 : i32
    return %arg0, %c0_i32 : i32, i32
  }
}

</mosaic_0001>

<llo_original>
// kernel: tpu_custom_call.1
$region0: #{tpu_custom_call.1}
  #allocation0 [shape = 'u32[]', space=smem, size = 0x4, offset = 0x4, fixed_abs, tag = 'smem constant byte address 0x4 - core index']
  #allocation1 [shape = 'u32[72,128]{1,0:T(1,128)}', space=vmem, size = 0x9000, scoped, tag = 'internal scratch']
  %s0 = inlined_call_operand.hbm [shape: f32[14,256], index: 0, kind: input, shape index: {}]
  %s1 = inlined_call_operand.hbm [shape: f32[2,4,256], index: 1, kind: input, shape index: {}]
  %s2 = inlined_call_operand.hbm [shape: f32[2,4], index: 2, kind: output, shape index: {}]
  %s3 = sld [smem:[#allocation0]]
  $region26: #{tpu_custom_call.1} parent=0
    _
  %s5 = ssub.s32 1, %s3
  %s6 = scalar_select 0, %s5, %s3
  $region1: #{tpu_custom_call.1} parent=0
    #allocation2 [shape = 'u8[16384]{0}', space=vmem, size = 0x4000, scoped, tag = 'input window, operand 0, single buffered']
    #allocation3 [shape = 's32[1]{0}', space=sflag, size = 0x4, scoped, tag = 'scoped memory for tpu_custom_call.1']
    #allocation4 [shape = 's32[1]{0}', space=sflag, size = 0x4, scoped, tag = 'scoped memory for tpu_custom_call.1']
    #allocation5 [shape = 'u8[8192]{0}', space=vmem, size = 0x2000, scoped, tag = 'input window, operand 1, single buffered']
    #allocation6 [shape = 's32[1]{0}', space=sflag, size = 0x4, scoped, tag = 'scoped memory for tpu_custom_call.1']
    #allocation7 [shape = 'u8[1024]{0}', space=vmem, size = 0x400, scoped, tag = 'output window, operand 0, single buffered']
    %7 = vsyncpa [#allocation3], 0
    %8 = vsyncpa [#allocation6], 0
    %9 = vsyncpa [#allocation4], 0
    // Predicated region
    $region2: #{tpu_custom_call.1} parent=1 // pred_check
      _
    $region3: #{tpu_custom_call.1} parent=1 // pred_check_branch
      %11 = sbr.rel (0) target = $region5
    $region4: #{tpu_custom_call.1} parent=1 // pred_region
      %13 = vsyncadd [#allocation3], 0
      %s14 = sshll.u32 %s0, 4
      %s15 = int_to_ptr.hbm [resolvable:$true] %s14
      %s16 = sshll.u32 [#allocation2], 4
      %s17 = int_to_ptr.vmem [resolvable:$true] %s16
      %22 = dma.hbm_to_vmem [thread:$0]  %s15, 512, %s17, [#allocation3], 256, 256, 16
    $region5: #{tpu_custom_call.1} parent=1 // pred_fallthru
      _
    // Predicated region
    $region6: #{tpu_custom_call.1} parent=1 // pred_check
      _
    $region7: #{tpu_custom_call.1} parent=1 // pred_check_branch
      %24 = sbr.rel (0) target = $region9
    $region8: #{tpu_custom_call.1} parent=1 // pred_region
      %26 = vsyncadd [#allocation6], 0
      %s27 = sshll.u32 %s1, 4
      %s28 = int_to_ptr.hbm [resolvable:$true] %s27
      %s29 = sshll.u32 [#allocation5], 4
      %s30 = int_to_ptr.vmem [resolvable:$true] %s29
      %35 = dma.hbm_to_vmem [thread:$0]  %s28, 256, %s30, [#allocation6], 128, 128, 8
    $region9: #{tpu_custom_call.1} parent=1 // pred_fallthru
      _
    // Predicated region
    $region10: #{tpu_custom_call.1} parent=1 // pred_check
      _
    $region11: #{tpu_custom_call.1} parent=1 // pred_check_branch
      %37 = sbr.rel (0) target = $region13
    $region12: #{tpu_custom_call.1} parent=1 // pred_region
      %39 = dma.done [#allocation3], 512
    $region13: #{tpu_custom_call.1} parent=1 // pred_fallthru
      _
    // Predicated region
    $region14: #{tpu_custom_call.1} parent=1 // pred_check
      _
    $region15: #{tpu_custom_call.1} parent=1 // pred_check_branch
      %41 = sbr.rel (0) target = $region17
    $region16: #{tpu_custom_call.1} parent=1 // pred_region
      %43 = dma.done [#allocation6], 256
    $region17: #{tpu_custom_call.1} parent=1 // pred_fallthru
      _
    %v44 = vld [vmem:[#allocation5] sm:$0xff]
    %v45 = vld [vmem:[#allocation5 + $0x8] sm:$0xff]
    %v46 = vld [vmem:[#allocation2] ss:$8 sm:$0x3]
    %v48 = vperm.slane %v46, 0
    %v49 = vperm.slane %v46, 1
    %v50 = vrot.slane %v49, 4
    %vm51 = vcmask 1043456
    %v52 = vsel %vm51, %v48, %v50
    %v54 = vadd.f32 %v44, %v52
    %v55 = vadd.f32 %v45, %v52
    %58 = vst [vmem:[#allocation1] ss:$2 sm:$0xff] %v54
    %v59 = vld.sshfl [vmem:[#allocation1] sm:$0xff pattern:$0x75316420]
    %v60 = vld.sshfl [vmem:[#allocation1 + $0x8] sm:$0xff pattern:$0x75316420]
    %s61 = scalar_lea.vmem [#allocation1], 16
    %62 = vst [vmem:[%s61] ss:$2 sm:$0xff] %v55
    %v63 = vld.sshfl [vmem:[#allocation1 + $0x10] sm:$0xff pattern:$0x75316420]
    %v64 = vld.sshfl [vmem:[#allocation1 + $0x18] sm:$0xff pattern:$0x75316420]
    %v69 = vsel %vm51, %v59, -inf
    %v70 = vsel %vm51, %v60, -inf
    %v71 = vmax.f32 %v69, %v70
    %72 = vmax.xlane.f32.xlu0 %v71
    %v73 = vpop.xlane.xlu0 %72
    %v74 = vsel %vm51, %v63, -inf
    %v75 = vsel %vm51, %v64, -inf
    %v76 = vmax.f32 %v74, %v75
    %77 = vmax.xlane.f32.xlu0 %v76
    %v78 = vpop.xlane.xlu0 %77
    %v79 = vmul.f32 %v73, %v73
    %v80 = vmul.f32 %v78, %v78
    %v83 = vlaneseq
    %v84 = vand.u32 %v83, 127
    %v85 = vperm.slane %v79, %v84
    %v86 = vperm.slane %v80, %v84
    %vm87 = vcmask 1041409
    %v88 = vsel %vm87, %v86, %v85
    %vm90 = vcmask 25600
    %v91 = vsel %vm90, %v88, 0.0
    %92 = vadd.xlane.f32.xlu0 %v91
    %v93 = vpop.xlane.xlu0 %92
    %v94 = vrsqrt.pop %v93
    %v95 = vmul.f32 %v94, %v93
    %v96 = vmul.f32 %v95, %v94
    %v97 = vmul.f32 0.5, %v96
    %v98 = vsub.f32 1.5, %v97
    %v99 = vmul.f32 %v94, %v98
    %v100 = vmul.f32 %v93, %v99
    %vm101 = vcmp.eq.f32.partialorder %v93, inf
    %v102 = vsel %vm101, %v93, %v100
    %vm103 = vcmp.eq.f32.partialorder %v93, 0.0
    %v104 = vand.u32 %v93, 2147483648
    %v105 = vsel %vm103, %v104, %v102
    %v106 = vadd.f32 %v105, 1e-12
    %v107 = vrcp.pop %v106
    %v108 = vmul.f32 %v106, %v107
    %v109 = vsub.f32 1.0, %v108
    %v110 = vmul.f32 %v107, %v109
    %v111 = vadd.f32 %v107, %v110
    %vm112 = vweird.f32 %v106
    %vm113 = vweird.f32 %v107
    %vm114 = vmor %vm112, %vm113
    %v115 = vsel %vm114, %v107, %v111
    %v116 = vand.u32 2147483647, %v106
    %vm117 = vcmp.eq.f32.partialorder %v116, 8.507059e+37
    %v118 = vand.u32 %v106, 2147483648
    %v119 = vor.u32 1.1754944e-38, %v118
    %v120 = vsel %vm117, %v119, %v115
    %v121 = vmul.f32 %v120, 2.0
    %v123 = vperm.slane %v121, 0
    %v124 = vperm.slane %v121, 1
    %v127 = vmul.f32 %v73, %v123
    %v128 = vmul.f32 %v78, %v124
    %v129 = vadd.f32 %v127, 0.0
    %v130 = vadd.f32 %v128, 0.0
    %s131 = scalar_lea.vmem [#allocation2], 1
    %v132 = vld [vmem:[%s131] ss:$8 sm:$0x3]
    %v134 = vperm.slane %v132, 0
    %v135 = vperm.slane %v132, 1
    %v136 = vrot.slane %v135, 4
    %v137 = vsel %vm51, %v134, %v136
    %v139 = vadd.f32 %v44, %v137
    %v140 = vadd.f32 %v45, %v137
    %143 = vst [vmem:[#allocation1] ss:$2 sm:$0xff] %v139
    %v144 = vld.sshfl [vmem:[#allocation1] sm:$0xff pattern:$0x75316420]
    %v145 = vld.sshfl [vmem:[#allocation1 + $0x8] sm:$0xff pattern:$0x75316420]
    %s146 = scalar_lea.vmem [#allocation1], 16
    %147 = vst [vmem:[%s146] ss:$2 sm:$0xff] %v140
    %v148 = vld.sshfl [vmem:[#allocation1 + $0x10] sm:$0xff pattern:$0x75316420]
    %v149 = vld.sshfl [vmem:[#allocation1 + $0x18] sm:$0xff pattern:$0x75316420]
    %v154 = vsel %vm51, %v144, -inf
    %v155 = vsel %vm51, %v145, -inf
    %v156 = vmax.f32 %v154, %v155
    %157 = vmax.xlane.f32.xlu0 %v156
    %v158 = vpop.xlane.xlu0 %157
    %v159 = vsel %vm51, %v148, -inf
    %v160 = vsel %vm51, %v149, -inf
    %v161 = vmax.f32 %v159, %v160
    %162 = vmax.xlane.f32.xlu0 %v161
    %v163 = vpop.xlane.xlu0 %162
    %v164 = vmul.f32 %v158, %v158
    %v165 = vmul.f32 %v163, %v163
    %v168 = vperm.slane %v164, %v84
    %v169 = vperm.slane %v165, %v84
    %v170 = vsel %vm87, %v169, %v168
    %v172 = vsel %vm90, %v170, 0.0
    %173 = vadd.xlane.f32.xlu0 %v172
    %v174 = vpop.xlane.xlu0 %173
    %v175 = vrsqrt.pop %v174
    %v176 = vmul.f32 %v175, %v174
    %v177 = vmul.f32 %v176, %v175
    %v178 = vmul.f32 0.5, %v177
    %v179 = vsub.f32 1.5, %v178
    %v180 = vmul.f32 %v175, %v179
    %v181 = vmul.f32 %v174, %v180
    %vm182 = vcmp.eq.f32.partialorder %v174, inf
    %v183 = vsel %vm182, %v174, %v181
    %vm184 = vcmp.eq.f32.partialorder %v174, 0.0
    %v185 = vand.u32 %v174, 2147483648
    %v186 = vsel %vm184, %v185, %v183
    %v187 = vadd.f32 %v186, 1e-12
    %v188 = vrcp.pop %v187
    %v189 = vmul.f32 %v187, %v188
    %v190 = vsub.f32 1.0, %v189
    %v191 = vmul.f32 %v188, %v190
    %v192 = vadd.f32 %v188, %v191
    %vm193 = vweird.f32 %v187
    %vm194 = vweird.f32 %v188
    %vm195 = vmor %vm193, %vm194
    %v196 = vsel %vm195, %v188, %v192
    %v197 = vand.u32 2147483647, %v187
    %vm198 = vcmp.eq.f32.partialorder %v197, 8.507059e+37
    %v199 = vand.u32 %v187, 2147483648
    %v200 = vor.u32 1.1754944e-38, %v199
    %v201 = vsel %vm198, %v200, %v196
    %v203 = vperm.slane %v201, 0
    %v204 = vperm.slane %v201, 1
    %v207 = vmul.f32 %v158, %v203
    %v208 = vmul.f32 %v163, %v204
    %v209 = vadd.f32 %v129, %v207
    %v210 = vadd.f32 %v130, %v208
    %s211 = scalar_lea.vmem [#allocation2], 2
    %v212 = vld [vmem:[%s211] ss:$8 sm:$0x3]
    %v214 = vperm.slane %v212, 0
    %v215 = vperm.slane %v212, 1
    %v216 = vrot.slane %v215, 4
    %v217 = vsel %vm51, %v214, %v216
    %v219 = vadd.f32 %v44, %v217
    %v220 = vadd.f32 %v45, %v217
    %223 = vst [vmem:[#allocation1] ss:$2 sm:$0xff] %v219
    %v224 = vld.sshfl [vmem:[#allocation1] sm:$0xff pattern:$0x75316420]
    %v225 = vld.sshfl [vmem:[#allocation1 + $0x8] sm:$0xff pattern:$0x75316420]
    %s226 = scalar_lea.vmem [#allocation1], 16
    %227 = vst [vmem:[%s226] ss:$2 sm:$0xff] %v220
    %v228 = vld.sshfl [vmem:[#allocation1 + $0x10] sm:$0xff pattern:$0x75316420]
    %v229 = vld.sshfl [vmem:[#allocation1 + $0x18] sm:$0xff pattern:$0x75316420]
    %v234 = vsel %vm51, %v224, -inf
    %v235 = vsel %vm51, %v225, -inf
    %v236 = vmax.f32 %v234, %v235
    %237 = vmax.xlane.f32.xlu0 %v236
    %v238 = vpop.xlane.xlu0 %237
    %v239 = vsel %vm51, %v228, -inf
    %v240 = vsel %vm51, %v229, -inf
    %v241 = vmax.f32 %v239, %v240
    %242 = vmax.xlane.f32.xlu0 %v241
    %v243 = vpop.xlane.xlu0 %242
    %v244 = vmul.f32 %v238, %v238
    %v245 = vmul.f32 %v243, %v243
    %v248 = vperm.slane %v244, %v84
    %v249 = vperm.slane %v245, %v84
    %v250 = vsel %vm87, %v249, %v248
    %v252 = vsel %vm90, %v250, 0.0
    %253 = vadd.xlane.f32.xlu0 %v252
    %v254 = vpop.xlane.xlu0 %253
    %v255 = vrsqrt.pop %v254
    %v256 = vmul.f32 %v255, %v254
    %v257 = vmul.f32 %v256, %v255
    %v258 = vmul.f32 0.5, %v257
    %v259 = vsub.f32 1.5, %v258
    %v260 = vmul.f32 %v255, %v259
    %v261 = vmul.f32 %v254, %v260
    %vm262 = vcmp.eq.f32.partialorder %v254, inf
    %v263 = vsel %vm262, %v254, %v261
    %vm264 = vcmp.eq.f32.partialorder %v254, 0.0
    %v265 = vand.u32 %v254, 2147483648
    %v266 = vsel %vm264, %v265, %v263
    %v267 = vadd.f32 %v266, 1e-12
    %v268 = vrcp.pop %v267
    %v269 = vmul.f32 %v267, %v268
    %v270 = vsub.f32 1.0, %v269
    %v271 = vmul.f32 %v268, %v270
    %v272 = vadd.f32 %v268, %v271
    %vm273 = vweird.f32 %v267
    %vm274 = vweird.f32 %v268
    %vm275 = vmor %vm273, %vm274
    %v276 = vsel %vm275, %v268, %v272
    %v277 = vand.u32 2147483647, %v267
    %vm278 = vcmp.eq.f32.partialorder %v277, 8.507059e+37
    %v279 = vand.u32 %v267, 2147483648
    %v280 = vor.u32 1.1754944e-38, %v279
    %v281 = vsel %vm278, %v280, %v276
    %v283 = vperm.slane %v281, 0
    %v284 = vperm.slane %v281, 1
    %v287 = vmul.f32 %v238, %v283
    %v288 = vmul.f32 %v243, %v284
    %v289 = vadd.f32 %v209, %v287
    %v290 = vadd.f32 %v210, %v288
    %s291 = scalar_lea.vmem [#allocation2], 3
    %v292 = vld [vmem:[%s291] ss:$8 sm:$0x3]
    %v294 = vperm.slane %v292, 0
    %v295 = vperm.slane %v292, 1
    %v296 = vrot.slane %v295, 4
    %v297 = vsel %vm51, %v294, %v296
    %v299 = vadd.f32 %v44, %v297
    %v300 = vadd.f32 %v45, %v297
    %303 = vst [vmem:[#allocation1] ss:$2 sm:$0xff] %v299
    %v304 = vld.sshfl [vmem:[#allocation1] sm:$0xff pattern:$0x75316420]
    %v305 = vld.sshfl [vmem:[#allocation1 + $0x8] sm:$0xff pattern:$0x75316420]
    %s306 = scalar_lea.vmem [#allocation1], 16
    %307 = vst [vmem:[%s306] ss:$2 sm:$0xff] %v300
    %v308 = vld.sshfl [vmem:[#allocation1 + $0x10] sm:$0xff pattern:$0x75316420]
    %v309 = vld.sshfl [vmem:[#allocation1 + $0x18] sm:$0xff pattern:$0x75316420]
    %v314 = vsel %vm51, %v304, -inf
    %v315 = vsel %vm51, %v305, -inf
    %v316 = vmax.f32 %v314, %v315
    %317 = vmax.xlane.f32.xlu0 %v316
    %v318 = vpop.xlane.xlu0 %317
    %v319 = vsel %vm51, %v308, -inf
    %v320 = vsel %vm51, %v309, -inf
    %v321 = vmax.f32 %v319, %v320
    %322 = vmax.xlane.f32.xlu0 %v321
    %v323 = vpop.xlane.xlu0 %322
    %v324 = vmul.f32 %v318, %v318
    %v325 = vmul.f32 %v323, %v323
    %v328 = vperm.slane %v324, %v84
    %v329 = vperm.slane %v325, %v84
    %v330 = vsel %vm87, %v329, %v328
    %v332 = vsel %vm90, %v330, 0.0
    %333 = vadd.xlane.f32.xlu0 %v332
    %v334 = vpop.xlane.xlu0 %333
    %v335 = vrsqrt.pop %v334
    %v336 = vmul.f32 %v335, %v334
    %v337 = vmul.f32 %v336, %v335
    %v338 = vmul.f32 0.5, %v337
    %v339 = vsub.f32 1.5, %v338
    %v340 = vmul.f32 %v335, %v339
    %v341 = vmul.f32 %v334, %v340
    %vm342 = vcmp.eq.f32.partialorder %v334, inf
    %v343 = vsel %vm342, %v334, %v341
    %vm344 = vcmp.eq.f32.partialorder %v334, 0.0
    %v345 = vand.u32 %v334, 2147483648
    %v346 = vsel %vm344, %v345, %v343
    %v347 = vadd.f32 %v346, 1e-12
    %v348 = vrcp.pop %v347
    %v349 = vmul.f32 %v347, %v348
    %v350 = vsub.f32 1.0, %v349
    %v351 = vmul.f32 %v348, %v350
    %v352 = vadd.f32 %v348, %v351
    %vm353 = vweird.f32 %v347
    %vm354 = vweird.f32 %v348
    %vm355 = vmor %vm353, %vm354
    %v356 = vsel %vm355, %v348, %v352
    %v357 = vand.u32 2147483647, %v347
    %vm358 = vcmp.eq.f32.partialorder %v357, 8.507059e+37
    %v359 = vand.u32 %v347, 2147483648
    %v360 = vor.u32 1.1754944e-38, %v359
    %v361 = vsel %vm358, %v360, %v356
    %v363 = vperm.slane %v361, 0
    %v364 = vperm.slane %v361, 1
    %v367 = vmul.f32 %v318, %v363
    %v368 = vmul.f32 %v323, %v364
    %v369 = vadd.f32 %v289, %v367
    %v370 = vadd.f32 %v290, %v368
    %s371 = scalar_lea.vmem [#allocation2], 4
    %v372 = vld [vmem:[%s371] ss:$8 sm:$0x3]
    %v374 = vperm.slane %v372, 0
    %v375 = vperm.slane %v372, 1
    %v376 = vrot.slane %v375, 4
    %v377 = vsel %vm51, %v374, %v376
    %v379 = vadd.f32 %v44, %v377
    %v380 = vadd.f32 %v45, %v377
    %383 = vst [vmem:[#allocation1] ss:$2 sm:$0xff] %v379
    %v384 = vld.sshfl [vmem:[#allocation1] sm:$0xff pattern:$0x75316420]
    %v385 = vld.sshfl [vmem:[#allocation1 + $0x8] sm:$0xff pattern:$0x75316420]
    %s386 = scalar_lea.vmem [#allocation1], 16
    %387 = vst [vmem:[%s386] ss:$2 sm:$0xff] %v380
    %v388 = vld.sshfl [vmem:[#allocation1 + $0x10] sm:$0xff pattern:$0x75316420]
    %v389 = vld.sshfl [vmem:[#allocation1 + $0x18] sm:$0xff pattern:$0x75316420]
    %v394 = vsel %vm51, %v384, -inf
    %v395 = vsel %vm51, %v385, -inf
    %v396 = vmax.f32 %v394, %v395
    %397 = vmax.xlane.f32.xlu0 %v396
    %v398 = vpop.xlane.xlu0 %397
    %v399 = vsel %vm51, %v388, -inf
    %v400 = vsel %vm51, %v389, -inf
    %v401 = vmax.f32 %v399, %v400
    %402 = vmax.xlane.f32.xlu0 %v401
    %v403 = vpop.xlane.xlu0 %402
    %v404 = vmul.f32 %v398, %v398
    %v405 = vmul.f32 %v403, %v403
    %v408 = vperm.slane %v404, %v84
    %v409 = vperm.slane %v405, %v84
    %v410 = vsel %vm87, %v409, %v408
    %v412 = vsel %vm90, %v410, 0.0
    %413 = vadd.xlane.f32.xlu0 %v412
    %v414 = vpop.xlane.xlu0 %413
    %v415 = vrsqrt.pop %v414
    %v416 = vmul.f32 %v415, %v414
    %v417 = vmul.f32 %v416, %v415
    %v418 = vmul.f32 0.5, %v417
    %v419 = vsub.f32 1.5, %v418
    %v420 = vmul.f32 %v415, %v419
    %v421 = vmul.f32 %v414, %v420
    %vm422 = vcmp.eq.f32.partialorder %v414, inf
    %v423 = vsel %vm422, %v414, %v421
    %vm424 = vcmp.eq.f32.partialorder %v414, 0.0
    %v425 = vand.u32 %v414, 2147483648
    %v426 = vsel %vm424, %v425, %v423
    %v427 = vadd.f32 %v426, 1e-12
    %v428 = vrcp.pop %v427
    %v429 = vmul.f32 %v427, %v428
    %v430 = vsub.f32 1.0, %v429
    %v431 = vmul.f32 %v428, %v430
    %v432 = vadd.f32 %v428, %v431
    %vm433 = vweird.f32 %v427
    %vm434 = vweird.f32 %v428
    %vm435 = vmor %vm433, %vm434
    %v436 = vsel %vm435, %v428, %v432
    %v437 = vand.u32 2147483647, %v427
    %vm438 = vcmp.eq.f32.partialorder %v437, 8.507059e+37
    %v439 = vand.u32 %v427, 2147483648
    %v440 = vor.u32 1.1754944e-38, %v439
    %v441 = vsel %vm438, %v440, %v436
    %v443 = vperm.slane %v441, 0
    %v444 = vperm.slane %v441, 1
    %v447 = vmul.f32 %v398, %v443
    %v448 = vmul.f32 %v403, %v444
    %v449 = vadd.f32 %v369, %v447
    %v450 = vadd.f32 %v370, %v448
    %s451 = scalar_lea.vmem [#allocation2], 5
    %v452 = vld [vmem:[%s451] ss:$8 sm:$0x3]
    %v454 = vperm.slane %v452, 0
    %v455 = vperm.slane %v452, 1
    %v456 = vrot.slane %v455, 4
    %v457 = vsel %vm51, %v454, %v456
    %v459 = vadd.f32 %v44, %v457
    %v460 = vadd.f32 %v45, %v457
    %463 = vst [vmem:[#allocation1] ss:$2 sm:$0xff] %v459
    %v464 = vld.sshfl [vmem:[#allocation1] sm:$0xff pattern:$0x75316420]
    %v465 = vld.sshfl [vmem:[#allocation1 + $0x8] sm:$0xff pattern:$0x75316420]
    %s466 = scalar_lea.vmem [#allocation1], 16
    %467 = vst [vmem:[%s466] ss:$2 sm:$0xff] %v460
    %v468 = vld.sshfl [vmem:[#allocation1 + $0x10] sm:$0xff pattern:$0x75316420]
    %v469 = vld.sshfl [vmem:[#allocation1 + $0x18] sm:$0xff pattern:$0x75316420]
    %v474 = vsel %vm51, %v464, -inf
    %v475 = vsel %vm51, %v465, -inf
    %v476 = vmax.f32 %v474, %v475
    %477 = vmax.xlane.f32.xlu0 %v476
    %v478 = vpop.xlane.xlu0 %477
    %v479 = vsel %vm51, %v468, -inf
    %v480 = vsel %vm51, %v469, -inf
    %v481 = vmax.f32 %v479, %v480
    %482 = vmax.xlane.f32.xlu0 %v481
    %v483 = vpop.xlane.xlu0 %482
    %v484 = vmul.f32 %v478, %v478
    %v485 = vmul.f32 %v483, %v483
    %v488 = vperm.slane %v484, %v84
    %v489 = vperm.slane %v485, %v84
    %v490 = vsel %vm87, %v489, %v488
    %v492 = vsel %vm90, %v490, 0.0
    %493 = vadd.xlane.f32.xlu0 %v492
    %v494 = vpop.xlane.xlu0 %493
    %v495 = vrsqrt.pop %v494
    %v496 = vmul.f32 %v495, %v494
    %v497 = vmul.f32 %v496, %v495
    %v498 = vmul.f32 0.5, %v497
    %v499 = vsub.f32 1.5, %v498
    %v500 = vmul.f32 %v495, %v499
    %v501 = vmul.f32 %v494, %v500
    %vm502 = vcmp.eq.f32.partialorder %v494, inf
    %v503 = vsel %vm502, %v494, %v501
    %vm504 = vcmp.eq.f32.partialorder %v494, 0.0
    %v505 = vand.u32 %v494, 2147483648
    %v506 = vsel %vm504, %v505, %v503
    %v507 = vadd.f32 %v506, 1e-12
    %v508 = vrcp.pop %v507
    %v509 = vmul.f32 %v507, %v508
    %v510 = vsub.f32 1.0, %v509
    %v511 = vmul.f32 %v508, %v510
    %v512 = vadd.f32 %v508, %v511
    %vm513 = vweird.f32 %v507
    %vm514 = vweird.f32 %v508
    %vm515 = vmor %vm513, %vm514
    %v516 = vsel %vm515, %v508, %v512
    %v517 = vand.u32 2147483647, %v507
    %vm518 = vcmp.eq.f32.partialorder %v517, 8.507059e+37
    %v519 = vand.u32 %v507, 2147483648
    %v520 = vor.u32 1.1754944e-38, %v519
    %v521 = vsel %vm518, %v520, %v516
    %v523 = vperm.slane %v521, 0
    %v524 = vperm.slane %v521, 1
    %v527 = vmul.f32 %v478, %v523
    %v528 = vmul.f32 %v483, %v524
    %v529 = vadd.f32 %v449, %v527
    %v530 = vadd.f32 %v450, %v528
    %s531 = scalar_lea.vmem [#allocation2], 6
    %v532 = vld [vmem:[%s531] ss:$8 sm:$0x3]
    %v534 = vperm.slane %v532, 0
    %v535 = vperm.slane %v532, 1
    %v536 = vrot.slane %v535, 4
    %v537 = vsel %vm51, %v534, %v536
    %v539 = vadd.f32 %v44, %v537
    %v540 = vadd.f32 %v45, %v537
    %543 = vst [vmem:[#allocation1] ss:$2 sm:$0xff] %v539
    %v544 = vld.sshfl [vmem:[#allocation1] sm:$0xff pattern:$0x75316420]
    %v545 = vld.sshfl [vmem:[#allocation1 + $0x8] sm:$0xff pattern:$0x75316420]
    %s546 = scalar_lea.vmem [#allocation1], 16
    %547 = vst [vmem:[%s546] ss:$2 sm:$0xff] %v540
    %v548 = vld.sshfl [vmem:[#allocation1 + $0x10] sm:$0xff pattern:$0x75316420]
    %v549 = vld.sshfl [vmem:[#allocation1 + $0x18] sm:$0xff pattern:$0x75316420]
    %v554 = vsel %vm51, %v544, -inf
    %v555 = vsel %vm51, %v545, -inf
    %v556 = vmax.f32 %v554, %v555
    %557 = vmax.xlane.f32.xlu0 %v556
    %v558 = vpop.xlane.xlu0 %557
    %v559 = vsel %vm51, %v548, -inf
    %v560 = vsel %vm51, %v549, -inf
    %v561 = vmax.f32 %v559, %v560
    %562 = vmax.xlane.f32.xlu0 %v561
    %v563 = vpop.xlane.xlu0 %562
    %v564 = vmul.f32 %v558, %v558
    %v565 = vmul.f32 %v563, %v563
    %v568 = vperm.slane %v564, %v84
    %v569 = vperm.slane %v565, %v84
    %v570 = vsel %vm87, %v569, %v568
    %v572 = vsel %vm90, %v570, 0.0
    %573 = vadd.xlane.f32.xlu0 %v572
    %v574 = vpop.xlane.xlu0 %573
    %v575 = vrsqrt.pop %v574
    %v576 = vmul.f32 %v575, %v574
    %v577 = vmul.f32 %v576, %v575
    %v578 = vmul.f32 0.5, %v577
    %v579 = vsub.f32 1.5, %v578
    %v580 = vmul.f32 %v575, %v579
    %v581 = vmul.f32 %v574, %v580
    %vm582 = vcmp.eq.f32.partialorder %v574, inf
    %v583 = vsel %vm582, %v574, %v581
    %vm584 = vcmp.eq.f32.partialorder %v574, 0.0
    %v585 = vand.u32 %v574, 2147483648
    %v586 = vsel %vm584, %v585, %v583
    %v587 = vadd.f32 %v586, 1e-12
    %v588 = vrcp.pop %v587
    %v589 = vmul.f32 %v587, %v588
    %v590 = vsub.f32 1.0, %v589
    %v591 = vmul.f32 %v588, %v590
    %v592 = vadd.f32 %v588, %v591
    %vm593 = vweird.f32 %v587
    %vm594 = vweird.f32 %v588
    %vm595 = vmor %vm593, %vm594
    %v596 = vsel %vm595, %v588, %v592
    %v597 = vand.u32 2147483647, %v587
    %vm598 = vcmp.eq.f32.partialorder %v597, 8.507059e+37
    %v599 = vand.u32 %v587, 2147483648
    %v600 = vor.u32 1.1754944e-38, %v599
    %v601 = vsel %vm598, %v600, %v596
    %v603 = vperm.slane %v601, 0
    %v604 = vperm.slane %v601, 1
    %v607 = vmul.f32 %v558, %v603
    %v608 = vmul.f32 %v563, %v604
    %v609 = vadd.f32 %v529, %v607
    %v610 = vadd.f32 %v530, %v608
    %s611 = scalar_lea.vmem [#allocation2], 7
    %v612 = vld [vmem:[%s611] ss:$8 sm:$0x3]
    %v614 = vperm.slane %v612, 0
    %v615 = vperm.slane %v612, 1
    %v616 = vrot.slane %v615, 4
    %v617 = vsel %vm51, %v614, %v616
    %v619 = vadd.f32 %v44, %v617
    %v620 = vadd.f32 %v45, %v617
    %623 = vst [vmem:[#allocation1] ss:$2 sm:$0xff] %v619
    %v624 = vld.sshfl [vmem:[#allocation1] sm:$0xff pattern:$0x75316420]
    %v625 = vld.sshfl [vmem:[#allocation1 + $0x8] sm:$0xff pattern:$0x75316420]
    %s626 = scalar_lea.vmem [#allocation1], 16
    %627 = vst [vmem:[%s626] ss:$2 sm:$0xff] %v620
    %v628 = vld.sshfl [vmem:[#allocation1 + $0x10] sm:$0xff pattern:$0x75316420]
    %v629 = vld.sshfl [vmem:[#allocation1 + $0x18] sm:$0xff pattern:$0x75316420]
    %v634 = vsel %vm51, %v624, -inf
    %v635 = vsel %vm51, %v625, -inf
    %v636 = vmax.f32 %v634, %v635
    %637 = vmax.xlane.f32.xlu0 %v636
    %v638 = vpop.xlane.xlu0 %637
    %v639 = vsel %vm51, %v628, -inf
    %v640 = vsel %vm51, %v629, -inf
    %v641 = vmax.f32 %v639, %v640
    %642 = vmax.xlane.f32.xlu0 %v641
    %v643 = vpop.xlane.xlu0 %642
    %v644 = vmul.f32 %v638, %v638
    %v645 = vmul.f32 %v643, %v643
    %v648 = vperm.slane %v644, %v84
    %v649 = vperm.slane %v645, %v84
    %v650 = vsel %vm87, %v649, %v648
    %v652 = vsel %vm90, %v650, 0.0
    %653 = vadd.xlane.f32.xlu0 %v652
    %v654 = vpop.xlane.xlu0 %653
    %v655 = vrsqrt.pop %v654
    %v656 = vmul.f32 %v655, %v654
    %v657 = vmul.f32 %v656, %v655
    %v658 = vmul.f32 0.5, %v657
    %v659 = vsub.f32 1.5, %v658
    %v660 = vmul.f32 %v655, %v659
    %v661 = vmul.f32 %v654, %v660
    %vm662 = vcmp.eq.f32.partialorder %v654, inf
    %v663 = vsel %vm662, %v654, %v661
    %vm664 = vcmp.eq.f32.partialorder %v654, 0.0
    %v665 = vand.u32 %v654, 2147483648
    %v666 = vsel %vm664, %v665, %v663
    %v667 = vadd.f32 %v666, 1e-12
    %v668 = vrcp.pop %v667
    %v669 = vmul.f32 %v667, %v668
    %v670 = vsub.f32 1.0, %v669
    %v671 = vmul.f32 %v668, %v670
    %v672 = vadd.f32 %v668, %v671
    %vm673 = vweird.f32 %v667
    %vm674 = vweird.f32 %v668
    %vm675 = vmor %vm673, %vm674
    %v676 = vsel %vm675, %v668, %v672
    %v677 = vand.u32 2147483647, %v667
    %vm678 = vcmp.eq.f32.partialorder %v677, 8.507059e+37
    %v679 = vand.u32 %v667, 2147483648
    %v680 = vor.u32 1.1754944e-38, %v679
    %v681 = vsel %vm678, %v680, %v676
    %v683 = vperm.slane %v681, 0
    %v684 = vperm.slane %v681, 1
    %v687 = vmul.f32 %v638, %v683
    %v688 = vmul.f32 %v643, %v684
    %v689 = vadd.f32 %v609, %v687
    %v690 = vadd.f32 %v610, %v688
    %s691 = scalar_lea.vmem [#allocation2], 16
    %v692 = vld [vmem:[%s691] ss:$8 sm:$0x3]
    %v694 = vperm.slane %v692, 0
    %v695 = vperm.slane %v692, 1
    %v696 = vrot.slane %v695, 4
    %v697 = vsel %vm51, %v694, %v696
    %v699 = vadd.f32 %v44, %v697
    %v700 = vadd.f32 %v45, %v697
    %703 = vst [vmem:[#allocation1] ss:$2 sm:$0xff] %v699
    %v704 = vld.sshfl [vmem:[#allocation1] sm:$0xff pattern:$0x75316420]
    %v705 = vld.sshfl [vmem:[#allocation1 + $0x8] sm:$0xff pattern:$0x75316420]
    %s706 = scalar_lea.vmem [#allocation1], 16
    %707 = vst [vmem:[%s706] ss:$2 sm:$0xff] %v700
    %v708 = vld.sshfl [vmem:[#allocation1 + $0x10] sm:$0xff pattern:$0x75316420]
    %v709 = vld.sshfl [vmem:[#allocation1 + $0x18] sm:$0xff pattern:$0x75316420]
    %v714 = vsel %vm51, %v704, -inf
    %v715 = vsel %vm51, %v705, -inf
    %v716 = vmax.f32 %v714, %v715
    %717 = vmax.xlane.f32.xlu0 %v716
    %v718 = vpop.xlane.xlu0 %717
    %v719 = vsel %vm51, %v708, -inf
    %v720 = vsel %vm51, %v709, -inf
    %v721 = vmax.f32 %v719, %v720
    %722 = vmax.xlane.f32.xlu0 %v721
    %v723 = vpop.xlane.xlu0 %722
    %v724 = vmul.f32 %v718, %v718
    %v725 = vmul.f32 %v723, %v723
    %v728 = vperm.slane %v724, %v84
    %v729 = vperm.slane %v725, %v84
    %v730 = vsel %vm87, %v729, %v728
    %v732 = vsel %vm90, %v730, 0.0
    %733 = vadd.xlane.f32.xlu0 %v732
    %v734 = vpop.xlane.xlu0 %733
    %v735 = vrsqrt.pop %v734
    %v736 = vmul.f32 %v735, %v734
    %v737 = vmul.f32 %v736, %v735
    %v738 = vmul.f32 0.5, %v737
    %v739 = vsub.f32 1.5, %v738
    %v740 = vmul.f32 %v735, %v739
    %v741 = vmul.f32 %v734, %v740
    %vm742 = vcmp.eq.f32.partialorder %v734, inf
    %v743 = vsel %vm742, %v734, %v741
    %vm744 = vcmp.eq.f32.partialorder %v734, 0.0
    %v745 = vand.u32 %v734, 2147483648
    %v746 = vsel %vm744, %v745, %v743
    %v747 = vadd.f32 %v746, 1e-12
    %v748 = vrcp.pop %v747
    %v749 = vmul.f32 %v747, %v748
    %v750 = vsub.f32 1.0, %v749
    %v751 = vmul.f32 %v748, %v750
    %v752 = vadd.f32 %v748, %v751
    %vm753 = vweird.f32 %v747
    %vm754 = vweird.f32 %v748
    %vm755 = vmor %vm753, %vm754
    %v756 = vsel %vm755, %v748, %v752
    %v757 = vand.u32 2147483647, %v747
    %vm758 = vcmp.eq.f32.partialorder %v757, 8.507059e+37
    %v759 = vand.u32 %v747, 2147483648
    %v760 = vor.u32 1.1754944e-38, %v759
    %v761 = vsel %vm758, %v760, %v756
    %v763 = vperm.slane %v761, 0
    %v764 = vperm.slane %v761, 1
    %v767 = vmul.f32 %v718, %v763
    %v768 = vmul.f32 %v723, %v764
    %v769 = vadd.f32 %v689, %v767
    %v770 = vadd.f32 %v690, %v768
    %s771 = scalar_lea.vmem [#allocation2], 17
    %v772 = vld [vmem:[%s771] ss:$8 sm:$0x3]
    %v774 = vperm.slane %v772, 0
    %v775 = vperm.slane %v772, 1
    %v776 = vrot.slane %v775, 4
    %v777 = vsel %vm51, %v774, %v776
    %v779 = vadd.f32 %v44, %v777
    %v780 = vadd.f32 %v45, %v777
    %783 = vst [vmem:[#allocation1] ss:$2 sm:$0xff] %v779
    %v784 = vld.sshfl [vmem:[#allocation1] sm:$0xff pattern:$0x75316420]
    %v785 = vld.sshfl [vmem:[#allocation1 + $0x8] sm:$0xff pattern:$0x75316420]
    %s786 = scalar_lea.vmem [#allocation1], 16
    %787 = vst [vmem:[%s786] ss:$2 sm:$0xff] %v780
    %v788 = vld.sshfl [vmem:[#allocation1 + $0x10] sm:$0xff pattern:$0x75316420]
    %v789 = vld.sshfl [vmem:[#allocation1 + $0x18] sm:$0xff pattern:$0x75316420]
    %v794 = vsel %vm51, %v784, -inf
    %v795 = vsel %vm51, %v785, -inf
    %v796 = vmax.f32 %v794, %v795
    %797 = vmax.xlane.f32.xlu0 %v796
    %v798 = vpop.xlane.xlu0 %797
    %v799 = vsel %vm51, %v788, -inf
    %v800 = vsel %vm51, %v789, -inf
    %v801 = vmax.f32 %v799, %v800
    %802 = vmax.xlane.f32.xlu0 %v801
    %v803 = vpop.xlane.xlu0 %802
    %v804 = vmul.f32 %v798, %v798
    %v805 = vmul.f32 %v803, %v803
    %v808 = vperm.slane %v804, %v84
    %v809 = vperm.slane %v805, %v84
    %v810 = vsel %vm87, %v809, %v808
    %v812 = vsel %vm90, %v810, 0.0
    %813 = vadd.xlane.f32.xlu0 %v812
    %v814 = vpop.xlane.xlu0 %813
    %v815 = vrsqrt.pop %v814
    %v816 = vmul.f32 %v815, %v814
    %v817 = vmul.f32 %v816, %v815
    %v818 = vmul.f32 0.5, %v817
    %v819 = vsub.f32 1.5, %v818
    %v820 = vmul.f32 %v815, %v819
    %v821 = vmul.f32 %v814, %v820
    %vm822 = vcmp.eq.f32.partialorder %v814, inf
    %v823 = vsel %vm822, %v814, %v821
    %vm824 = vcmp.eq.f32.partialorder %v814, 0.0
    %v825 = vand.u32 %v814, 2147483648
    %v826 = vsel %vm824, %v825, %v823
    %v827 = vadd.f32 %v826, 1e-12
    %v828 = vrcp.pop %v827
    %v829 = vmul.f32 %v827, %v828
    %v830 = vsub.f32 1.0, %v829
    %v831 = vmul.f32 %v828, %v830
    %v832 = vadd.f32 %v828, %v831
    %vm833 = vweird.f32 %v827
    %vm834 = vweird.f32 %v828
    %vm835 = vmor %vm833, %vm834
    %v836 = vsel %vm835, %v828, %v832
    %v837 = vand.u32 2147483647, %v827
    %vm838 = vcmp.eq.f32.partialorder %v837, 8.507059e+37
    %v839 = vand.u32 %v827, 2147483648
    %v840 = vor.u32 1.1754944e-38, %v839
    %v841 = vsel %vm838, %v840, %v836
    %v843 = vperm.slane %v841, 0
    %v844 = vperm.slane %v841, 1
    %v847 = vmul.f32 %v798, %v843
    %v848 = vmul.f32 %v803, %v844
    %v849 = vadd.f32 %v769, %v847
    %v850 = vadd.f32 %v770, %v848
    %s851 = scalar_lea.vmem [#allocation2], 18
    %v852 = vld [vmem:[%s851] ss:$8 sm:$0x3]
    %v854 = vperm.slane %v852, 0
    %v855 = vperm.slane %v852, 1
    %v856 = vrot.slane %v855, 4
    %v857 = vsel %vm51, %v854, %v856
    %v859 = vadd.f32 %v44, %v857
    %v860 = vadd.f32 %v45, %v857
    %863 = vst [vmem:[#allocation1] ss:$2 sm:$0xff] %v859
    %v864 = vld.sshfl [vmem:[#allocation1] sm:$0xff pattern:$0x75316420]
    %v865 = vld.sshfl [vmem:[#allocation1 + $0x8] sm:$0xff pattern:$0x75316420]
    %s866 = scalar_lea.vmem [#allocation1], 16
    %867 = vst [vmem:[%s866] ss:$2 sm:$0xff] %v860
    %v868 = vld.sshfl [vmem:[#allocation1 + $0x10] sm:$0xff pattern:$0x75316420]
    %v869 = vld.sshfl [vmem:[#allocation1 + $0x18] sm:$0xff pattern:$0x75316420]
    %v874 = vsel %vm51, %v864, -inf
    %v875 = vsel %vm51, %v865, -inf
    %v876 = vmax.f32 %v874, %v875
    %877 = vmax.xlane.f32.xlu0 %v876
    %v878 = vpop.xlane.xlu0 %877
    %v879 = vsel %vm51, %v868, -inf
    %v880 = vsel %vm51, %v869, -inf
    %v881 = vmax.f32 %v879, %v880
    %882 = vmax.xlane.f32.xlu0 %v881
    %v883 = vpop.xlane.xlu0 %882
    %v884 = vmul.f32 %v878, %v878
    %v885 = vmul.f32 %v883, %v883
    %v888 = vperm.slane %v884, %v84
    %v889 = vperm.slane %v885, %v84
    %v890 = vsel %vm87, %v889, %v888
    %v892 = vsel %vm90, %v890, 0.0
    %893 = vadd.xlane.f32.xlu0 %v892
    %v894 = vpop.xlane.xlu0 %893
    %v895 = vrsqrt.pop %v894
    %v896 = vmul.f32 %v895, %v894
    %v897 = vmul.f32 %v896, %v895
    %v898 = vmul.f32 0.5, %v897
    %v899 = vsub.f32 1.5, %v898
    %v900 = vmul.f32 %v895, %v899
    %v901 = vmul.f32 %v894, %v900
    %vm902 = vcmp.eq.f32.partialorder %v894, inf
    %v903 = vsel %vm902, %v894, %v901
    %vm904 = vcmp.eq.f32.partialorder %v894, 0.0
    %v905 = vand.u32 %v894, 2147483648
    %v906 = vsel %vm904, %v905, %v903
    %v907 = vadd.f32 %v906, 1e-12
    %v908 = vrcp.pop %v907
    %v909 = vmul.f32 %v907, %v908
    %v910 = vsub.f32 1.0, %v909
    %v911 = vmul.f32 %v908, %v910
    %v912 = vadd.f32 %v908, %v911
    %vm913 = vweird.f32 %v907
    %vm914 = vweird.f32 %v908
    %vm915 = vmor %vm913, %vm914
    %v916 = vsel %vm915, %v908, %v912
    %v917 = vand.u32 2147483647, %v907
    %vm918 = vcmp.eq.f32.partialorder %v917, 8.507059e+37
    %v919 = vand.u32 %v907, 2147483648
    %v920 = vor.u32 1.1754944e-38, %v919
    %v921 = vsel %vm918, %v920, %v916
    %v923 = vperm.slane %v921, 0
    %v924 = vperm.slane %v921, 1
    %v927 = vmul.f32 %v878, %v923
    %v928 = vmul.f32 %v883, %v924
    %v929 = vadd.f32 %v849, %v927
    %v930 = vadd.f32 %v850, %v928
    %s931 = scalar_lea.vmem [#allocation2], 19
    %v932 = vld [vmem:[%s931] ss:$8 sm:$0x3]
    %v934 = vperm.slane %v932, 0
    %v935 = vperm.slane %v932, 1
    %v936 = vrot.slane %v935, 4
    %v937 = vsel %vm51, %v934, %v936
    %v939 = vadd.f32 %v44, %v937
    %v940 = vadd.f32 %v45, %v937
    %943 = vst [vmem:[#allocation1] ss:$2 sm:$0xff] %v939
    %v944 = vld.sshfl [vmem:[#allocation1] sm:$0xff pattern:$0x75316420]
    %v945 = vld.sshfl [vmem:[#allocation1 + $0x8] sm:$0xff pattern:$0x75316420]
    %s946 = scalar_lea.vmem [#allocation1], 16
    %947 = vst [vmem:[%s946] ss:$2 sm:$0xff] %v940
    %v948 = vld.sshfl [vmem:[#allocation1 + $0x10] sm:$0xff pattern:$0x75316420]
    %v949 = vld.sshfl [vmem:[#allocation1 + $0x18] sm:$0xff pattern:$0x75316420]
    %v954 = vsel %vm51, %v944, -inf
    %v955 = vsel %vm51, %v945, -inf
    %v956 = vmax.f32 %v954, %v955
    %957 = vmax.xlane.f32.xlu0 %v956
    %v958 = vpop.xlane.xlu0 %957
    %v959 = vsel %vm51, %v948, -inf
    %v960 = vsel %vm51, %v949, -inf
    %v961 = vmax.f32 %v959, %v960
    %962 = vmax.xlane.f32.xlu0 %v961
    %v963 = vpop.xlane.xlu0 %962
    %v964 = vmul.f32 %v958, %v958
    %v965 = vmul.f32 %v963, %v963
    %v968 = vperm.slane %v964, %v84
    %v969 = vperm.slane %v965, %v84
    %v970 = vsel %vm87, %v969, %v968
    %v972 = vsel %vm90, %v970, 0.0
    %973 = vadd.xlane.f32.xlu0 %v972
    %v974 = vpop.xlane.xlu0 %973
    %v975 = vrsqrt.pop %v974
    %v976 = vmul.f32 %v975, %v974
    %v977 = vmul.f32 %v976, %v975
    %v978 = vmul.f32 0.5, %v977
    %v979 = vsub.f32 1.5, %v978
    %v980 = vmul.f32 %v975, %v979
    %v981 = vmul.f32 %v974, %v980
    %vm982 = vcmp.eq.f32.partialorder %v974, inf
    %v983 = vsel %vm982, %v974, %v981
    %vm984 = vcmp.eq.f32.partialorder %v974, 0.0
    %v985 = vand.u32 %v974, 2147483648
    %v986 = vsel %vm984, %v985, %v983
    %v987 = vadd.f32 %v986, 1e-12
    %v988 = vrcp.pop %v987
    %v989 = vmul.f32 %v987, %v988
    %v990 = vsub.f32 1.0, %v989
    %v991 = vmul.f32 %v988, %v990
    %v992 = vadd.f32 %v988, %v991
    %vm993 = vweird.f32 %v987
    %vm994 = vweird.f32 %v988
    %vm995 = vmor %vm993, %vm994
    %v996 = vsel %vm995, %v988, %v992
    %v997 = vand.u32 2147483647, %v987
    %vm998 = vcmp.eq.f32.partialorder %v997, 8.507059e+37
    %v999 = vand.u32 %v987, 2147483648
    %v1000 = vor.u32 1.1754944e-38, %v999
    %v1001 = vsel %vm998, %v1000, %v996
    %v1003 = vperm.slane %v1001, 0
    %v1004 = vperm.slane %v1001, 1
    %v1007 = vmul.f32 %v958, %v1003
    %v1008 = vmul.f32 %v963, %v1004
    %v1009 = vadd.f32 %v929, %v1007
    %v1010 = vadd.f32 %v930, %v1008
    %s1011 = scalar_lea.vmem [#allocation2], 20
    %v1012 = vld [vmem:[%s1011] ss:$8 sm:$0x3]
    %v1014 = vperm.slane %v1012, 0
    %v1015 = vperm.slane %v1012, 1
    %v1016 = vrot.slane %v1015, 4
    %v1017 = vsel %vm51, %v1014, %v1016
    %v1019 = vadd.f32 %v44, %v1017
    %v1020 = vadd.f32 %v45, %v1017
    %1023 = vst [vmem:[#allocation1] ss:$2 sm:$0xff] %v1019
    %v1024 = vld.sshfl [vmem:[#allocation1] sm:$0xff pattern:$0x75316420]
    %v1025 = vld.sshfl [vmem:[#allocation1 + $0x8] sm:$0xff pattern:$0x75316420]
    %s1026 = scalar_lea.vmem [#allocation1], 16
    %1027 = vst [vmem:[%s1026] ss:$2 sm:$0xff] %v1020
    %v1028 = vld.sshfl [vmem:[#allocation1 + $0x10] sm:$0xff pattern:$0x75316420]
    %v1029 = vld.sshfl [vmem:[#allocation1 + $0x18] sm:$0xff pattern:$0x75316420]
    %v1034 = vsel %vm51, %v1024, -inf
    %v1035 = vsel %vm51, %v1025, -inf
    %v1036 = vmax.f32 %v1034, %v1035
    %1037 = vmax.xlane.f32.xlu0 %v1036
    %v1038 = vpop.xlane.xlu0 %1037
    %v1039 = vsel %vm51, %v1028, -inf
    %v1040 = vsel %vm51, %v1029, -inf
    %v1041 = vmax.f32 %v1039, %v1040
    %1042 = vmax.xlane.f32.xlu0 %v1041
    %v1043 = vpop.xlane.xlu0 %1042
    %v1044 = vmul.f32 %v1038, %v1038
    %v1045 = vmul.f32 %v1043, %v1043
    %v1048 = vperm.slane %v1044, %v84
    %v1049 = vperm.slane %v1045, %v84
    %v1050 = vsel %vm87, %v1049, %v1048
    %v1052 = vsel %vm90, %v1050, 0.0
    %1053 = vadd.xlane.f32.xlu0 %v1052
    %v1054 = vpop.xlane.xlu0 %1053
    %v1055 = vrsqrt.pop %v1054
    %v1056 = vmul.f32 %v1055, %v1054
    %v1057 = vmul.f32 %v1056, %v1055
    %v1058 = vmul.f32 0.5, %v1057
    %v1059 = vsub.f32 1.5, %v1058
    %v1060 = vmul.f32 %v1055, %v1059
    %v1061 = vmul.f32 %v1054, %v1060
    %vm1062 = vcmp.eq.f32.partialorder %v1054, inf
    %v1063 = vsel %vm1062, %v1054, %v1061
    %vm1064 = vcmp.eq.f32.partialorder %v1054, 0.0
    %v1065 = vand.u32 %v1054, 2147483648
    %v1066 = vsel %vm1064, %v1065, %v1063
    %v1067 = vadd.f32 %v1066, 1e-12
    %v1068 = vrcp.pop %v1067
    %v1069 = vmul.f32 %v1067, %v1068
    %v1070 = vsub.f32 1.0, %v1069
    %v1071 = vmul.f32 %v1068, %v1070
    %v1072 = vadd.f32 %v1068, %v1071
    %vm1073 = vweird.f32 %v1067
    %vm1074 = vweird.f32 %v1068
    %vm1075 = vmor %vm1073, %vm1074
    %v1076 = vsel %vm1075, %v1068, %v1072
    %v1077 = vand.u32 2147483647, %v1067
    %vm1078 = vcmp.eq.f32.partialorder %v1077, 8.507059e+37
    %v1079 = vand.u32 %v1067, 2147483648
    %v1080 = vor.u32 1.1754944e-38, %v1079
    %v1081 = vsel %vm1078, %v1080, %v1076
    %v1083 = vperm.slane %v1081, 0
    %v1084 = vperm.slane %v1081, 1
    %v1087 = vmul.f32 %v1038, %v1083
    %v1088 = vmul.f32 %v1043, %v1084
    %v1089 = vadd.f32 %v1009, %v1087
    %v1090 = vadd.f32 %v1010, %v1088
    %s1091 = scalar_lea.vmem [#allocation2], 21
    %v1092 = vld [vmem:[%s1091] ss:$8 sm:$0x3]
    %v1094 = vperm.slane %v1092, 0
    %v1095 = vperm.slane %v1092, 1
    %v1096 = vrot.slane %v1095, 4
    %v1097 = vsel %vm51, %v1094, %v1096
    %v1099 = vadd.f32 %v44, %v1097
    %v1100 = vadd.f32 %v45, %v1097
    %1103 = vst [vmem:[#allocation1] ss:$2 sm:$0xff] %v1099
    %v1104 = vld.sshfl [vmem:[#allocation1] sm:$0xff pattern:$0x75316420]
    %v1105 = vld.sshfl [vmem:[#allocation1 + $0x8] sm:$0xff pattern:$0x75316420]
    %s1106 = scalar_lea.vmem [#allocation1], 16
    %1107 = vst [vmem:[%s1106] ss:$2 sm:$0xff] %v1100
    %v1108 = vld.sshfl [vmem:[#allocation1 + $0x10] sm:$0xff pattern:$0x75316420]
    %v1109 = vld.sshfl [vmem:[#allocation1 + $0x18] sm:$0xff pattern:$0x75316420]
    %v1114 = vsel %vm51, %v1104, -inf
    %v1115 = vsel %vm51, %v1105, -inf
    %v1116 = vmax.f32 %v1114, %v1115
    %1117 = vmax.xlane.f32.xlu0 %v1116
    %v1118 = vpop.xlane.xlu0 %1117
    %v1119 = vsel %vm51, %v1108, -inf
    %v1120 = vsel %vm51, %v1109, -inf
    %v1121 = vmax.f32 %v1119, %v1120
    %1122 = vmax.xlane.f32.xlu0 %v1121
    %v1123 = vpop.xlane.xlu0 %1122
    %v1124 = vmul.f32 %v1118, %v1118
    %v1125 = vmul.f32 %v1123, %v1123
    %v1128 = vperm.slane %v1124, %v84
    %v1129 = vperm.slane %v1125, %v84
    %v1130 = vsel %vm87, %v1129, %v1128
    %v1132 = vsel %vm90, %v1130, 0.0
    %1133 = vadd.xlane.f32.xlu0 %v1132
    %v1134 = vpop.xlane.xlu0 %1133
    %v1135 = vrsqrt.pop %v1134
    %v1136 = vmul.f32 %v1135, %v1134
    %v1137 = vmul.f32 %v1136, %v1135
    %v1138 = vmul.f32 0.5, %v1137
    %v1139 = vsub.f32 1.5, %v1138
    %v1140 = vmul.f32 %v1135, %v1139
    %v1141 = vmul.f32 %v1134, %v1140
    %vm1142 = vcmp.eq.f32.partialorder %v1134, inf
    %v1143 = vsel %vm1142, %v1134, %v1141
    %vm1144 = vcmp.eq.f32.partialorder %v1134, 0.0
    %v1145 = vand.u32 %v1134, 2147483648
    %v1146 = vsel %vm1144, %v1145, %v1143
    %v1147 = vadd.f32 %v1146, 1e-12
    %v1148 = vrcp.pop %v1147
    %v1149 = vmul.f32 %v1147, %v1148
    %v1150 = vsub.f32 1.0, %v1149
    %v1151 = vmul.f32 %v1148, %v1150
    %v1152 = vadd.f32 %v1148, %v1151
    %vm1153 = vweird.f32 %v1147
    %vm1154 = vweird.f32 %v1148
    %vm1155 = vmor %vm1153, %vm1154
    %v1156 = vsel %vm1155, %v1148, %v1152
    %v1157 = vand.u32 2147483647, %v1147
    %vm1158 = vcmp.eq.f32.partialorder %v1157, 8.507059e+37
    %v1159 = vand.u32 %v1147, 2147483648
    %v1160 = vor.u32 1.1754944e-38, %v1159
    %v1161 = vsel %vm1158, %v1160, %v1156
    %v1163 = vperm.slane %v1161, 0
    %v1164 = vperm.slane %v1161, 1
    %v1167 = vmul.f32 %v1118, %v1163
    %v1168 = vmul.f32 %v1123, %v1164
    %v1169 = vadd.f32 %v1089, %v1167
    %v1170 = vadd.f32 %v1090, %v1168
    %1173 = vset.pattern.permute.xlu0 0
    %1174 = vperm.xlu0 %1173, %v1169
    %v1175 = vpop.permute.xlu0 %1174
    %1176 = vset.pattern.permute.xlu0 0
    %1177 = vperm.xlu0 %1176, %v1170
    %v1178 = vpop.permute.xlu0 %1177
    %v1179 = vperm.slane %v1175, %v84
    %v1180 = vperm.slane %v1178, %v84
    %v1181 = vsel %vm87, %v1180, %v1179
    %1183 = vst.msk [vmem:[#allocation7] sm:$0x3] %vm90, %v1181
    // Predicated region
    $region18: #{tpu_custom_call.1} parent=1 // pred_check
      _
    $region19: #{tpu_custom_call.1} parent=1 // pred_check_branch
      %1185 = sbr.rel (0) target = $region21
    $region20: #{tpu_custom_call.1} parent=1 // pred_region
      %1187 = vsyncadd [#allocation4], 0
      %s1189 = sshll.u32 [#allocation7], 4
      %s1190 = int_to_ptr.vmem [resolvable:$true] %s1189
      %s1191 = sshll.u32 %s2, 4
      %s1192 = int_to_ptr.hbm [resolvable:$true] %s1191
      %1194 = dma.vmem_to_hbm [thread:$0]  %s1190, 32, %s1192, [#allocation4]
    $region21: #{tpu_custom_call.1} parent=1 // pred_fallthru
      _
    // Predicated region
    $region22: #{tpu_custom_call.1} parent=1 // pred_check
      _
    $region23: #{tpu_custom_call.1} parent=1 // pred_check_branch
      %1196 = sbr.rel (0) target = $region25
    $region24: #{tpu_custom_call.1} parent=1 // pred_region
      %1198 = dma.done [#allocation4], 32
    $region25: #{tpu_custom_call.1} parent=1 // pred_fallthru
      _
    %1199 = vsyncpa [#allocation3], 1
    %1200 = vsyncpa [#allocation6], 1
    %1201 = vsyncpa [#allocation4], 1

</llo_original>
